<compile_context>
chip_gen: v7x
topology: tpu7x:2x2x1
jax: 0.10.0
libtpu: 0.0.40
codegen_flags: <defaults>
</compile_context>

<pallas_src>
import math
from functools import partial

import numpy as np
import jax
import jax.numpy as jnp
from jax.experimental import pallas as pl
from jax.experimental.pallas import tpu as pltpu


_VMEM_LIMIT = 32 * 1024 * 1024
_TILE_CAP = 512   # double-buffered bf16 tiles + f32 acc stay well under 32 MiB


# ----------------------------------------------------------------------------
# helpers
# ----------------------------------------------------------------------------

def _ceil_to(x, m):
    return ((x + m - 1) // m) * m


def _tile_and_pad(dim, cap=_TILE_CAP):
    """Block size + padded extent for `dim`.

    Full-dim blocks (always legal on TPU regardless of 8/128 alignment) when the
    dim fits under the cap -> no jnp.pad / out-slice HBM round trips."""
    if dim <= cap:
        return dim, dim
    return cap, _ceil_to(dim, cap)


# ----------------------------------------------------------------------------
# Tiled matmul (+ optional bias, + optional fused residual add)
#   -- the conv / linear hot path
# ----------------------------------------------------------------------------

def _make_mm_kernel(has_bias, has_res):
    def kernel(*refs):
        x_ref, w_ref = refs[0], refs[1]
        i = 2
        b_ref = None
        r_ref = None
        if has_bias:
            b_ref = refs[i]
            i += 1
        if has_res:
            r_ref = refs[i]
            i += 1
        o_ref, acc_ref = refs[i], refs[i + 1]

        @pl.when(pl.program_id(2) == 0)
        def _():
            acc_ref[...] = jnp.zeros_like(acc_ref)

        acc_ref[...] += jnp.dot(x_ref[...], w_ref[...],
                                preferred_element_type=jnp.float32)

        @pl.when(pl.program_id(2) == pl.num_programs(2) - 1)
        def _():
            res = acc_ref[...]
            if has_bias:
                res = res + b_ref[...]
            if has_res:
                res = res + r_ref[...].astype(jnp.float32)
            o_ref[...] = res.astype(o_ref.dtype)

    return kernel


def matmul_bias(x, w, b=None, residual=None, out_dtype=jnp.bfloat16):
    """out = x @ w (+ b) (+ residual).  bf16 MXU operands, f32 accumulator."""
    M, K = x.shape
    K2, N = w.shape
    assert K == K2
    tm, Mp = _tile_and_pad(M)
    tk, Kp = _tile_and_pad(K)
    tn, Np = _tile_and_pad(N)

    xb = x.astype(jnp.bfloat16)
    wb = w.astype(jnp.bfloat16)
    if (Mp, Kp) != (M, K):
        xb = jnp.pad(xb, ((0, Mp - M), (0, Kp - K)))
    if (Kp, Np) != (K, N):
        wb = jnp.pad(wb, ((0, Kp - K), (0, Np - N)))

    operands = [xb, wb]
    in_specs = [pl.BlockSpec((tm, tk), lambda i, j, k: (i, k)),
                pl.BlockSpec((tk, tn), lambda i, j, k: (k, j))]

    if b is not None:
        bp = b.reshape(1, N).astype(jnp.float32)
        if Np != N:
            bp = jnp.pad(bp, ((0, 0), (0, Np - N)))
        operands.append(bp)
        in_specs.append(pl.BlockSpec((1, tn), lambda i, j, k: (0, j)))

    if residual is not None:
        rb = residual.astype(jnp.bfloat16)
        if (Mp, Np) != (M, N):
            rb = jnp.pad(rb, ((0, Mp - M), (0, Np - N)))
        operands.append(rb)
        in_specs.append(pl.BlockSpec((tm, tn), lambda i, j, k: (i, j)))

    grid = (Mp // tm, Np // tn, Kp // tk)
    out = pl.pallas_call(
        _make_mm_kernel(b is not None, residual is not None),
        out_shape=jax.ShapeDtypeStruct((Mp, Np), out_dtype),
        grid=grid,
        in_specs=in_specs,
        out_specs=pl.BlockSpec((tm, tn), lambda i, j, k: (i, j)),
        scratch_shapes=[pltpu.VMEM((tm, tn), jnp.float32)],
        compiler_params=pltpu.CompilerParams(
            dimension_semantics=("parallel", "parallel", "arbitrary"),
            vmem_limit_bytes=_VMEM_LIMIT),
    )(*operands)

    return out[:M, :N] if (Mp, Np) != (M, N) else out


# ----------------------------------------------------------------------------
# GroupNorm (+ optional SiLU) -- channels-last, one grid step per batch element
#   bf16 in / bf16 out, f32 statistics and affine (v5e-safe VPU math)
# ----------------------------------------------------------------------------

def _gn_silu_kernel(x_ref, p_ref, g_ref, b_ref, o_ref, *, eps, apply_silu):
    x = x_ref[0].astype(jnp.float32)               # (S, C)
    pmat = p_ref[...]                              # (C, C): per-group averaging
    colsum = jnp.sum(x, axis=0, keepdims=True)     # (1, C)
    mean = jnp.dot(colsum, pmat, preferred_element_type=jnp.float32)   # (1, C)
    d = x - mean
    sqsum = jnp.sum(d * d, axis=0, keepdims=True)  # (1, C)
    var = jnp.dot(sqsum, pmat, preferred_element_type=jnp.float32)     # (1, C)
    inv = jax.lax.rsqrt(var + eps)
    y = d * inv * g_ref[...] + b_ref[...]
    if apply_silu:
        y = y * jax.nn.sigmoid(y)
    o_ref[0] = y.astype(o_ref.dtype)


def _group_avg_mat(C, G, S):
    Cg = C // G
    gi = np.arange(C) // Cg
    m = (gi[:, None] == gi[None, :]).astype(np.float32) / float(S * Cg)
    return jnp.asarray(m)


def group_norm(x, gamma, beta, num_groups, apply_silu=False, eps=1e-6):
    """GroupNorm (optionally fused with SiLU). x is channels-last (N,D,H,W,C)."""
    N, D, H, W, C = x.shape
    S = D * H * W
    xr = x.reshape(N, S, C).astype(jnp.bfloat16)
    pmat = _group_avg_mat(C, num_groups, S)
    g = gamma.reshape(1, C).astype(jnp.float32)
    b = beta.reshape(1, C).astype(jnp.float32)
    out = pl.pallas_call(
        partial(_gn_silu_kernel, eps=eps, apply_silu=apply_silu),
        out_shape=jax.ShapeDtypeStruct((N, S, C), jnp.bfloat16),
        grid=(N,),
        in_specs=[
            pl.BlockSpec((1, S, C), lambda n: (n, 0, 0)),
            pl.BlockSpec((C, C), lambda n: (0, 0)),
            pl.BlockSpec((1, C), lambda n: (0, 0)),
            pl.BlockSpec((1, C), lambda n: (0, 0)),
        ],
        out_specs=pl.BlockSpec((1, S, C), lambda n: (n, 0, 0)),
        compiler_params=pltpu.CompilerParams(
            dimension_semantics=("parallel",),
            vmem_limit_bytes=_VMEM_LIMIT),
    )(xr, pmat, g, b)
    return out.reshape(N, D, H, W, C)


# ----------------------------------------------------------------------------
# Attention -- grid over (batch, heads), q pre-scaled, EUP softmax reciprocal,
#   per-head output written directly to its own block (no concat epilogue)
# ----------------------------------------------------------------------------

def _attn_kernel(q_ref, k_ref, v_ref, o_ref, *, scale):
    q = (q_ref[0, 0].astype(jnp.float32) * scale).astype(jnp.bfloat16)  # (S, dh)
    k = k_ref[0, 0]                                                     # (S, dh)
    v = v_ref[0, 0]                                                     # (S, dh)
    s = jnp.dot(q, k.T, preferred_element_type=jnp.float32)             # (S, S)
    s = s - jnp.max(s, axis=-1, keepdims=True)
    e = jnp.exp(s)
    p = e * pl.reciprocal(jnp.sum(e, axis=-1, keepdims=True), approx=True)
    o_ref[0, 0] = jnp.dot(p.astype(jnp.bfloat16), v,
                          preferred_element_type=jnp.float32).astype(o_ref.dtype)


def fused_attention(q, k, v, scale):
    """q/k/v: (N, heads, S, dim_head) bf16 -> (N, heads, S, dim_head) bf16."""
    N, H, S, Dh = q.shape
    spec = pl.BlockSpec((1, 1, S, Dh), lambda n, h: (n, h, 0, 0))
    return pl.pallas_call(
        partial(_attn_kernel, scale=scale),
        out_shape=jax.ShapeDtypeStruct((N, H, S, Dh), jnp.bfloat16),
        grid=(N, H),
        in_specs=[spec, spec, spec],
        out_specs=spec,
        compiler_params=pltpu.CompilerParams(
            dimension_semantics=("parallel", "parallel"),
            vmem_limit_bytes=_VMEM_LIMIT),
    )(q, k, v)


# ----------------------------------------------------------------------------
# Conv3d (channels-last) = tap extraction (XLA glue, bf16) + tiled Pallas matmul
#   with optional fused residual add in the epilogue
# ----------------------------------------------------------------------------

def conv3d_cl(x, p, stride=(1, 1, 1), padding=(1, 1, 1), residual=None):
    """x: (N, D, H, W, Cin); p['wm']: (kD*kH*kW*Cin, O); p['b']: (O,).
    residual (optional): channels-last tensor shaped like the conv output."""
    N, D, H, W, Cin = x.shape
    kD, kH, kW = p['k']
    pd, ph, pw = padding
    sd, sh, sw = stride
    xb = x.astype(jnp.bfloat16)
    xp = jnp.pad(xb, ((0, 0), (pd, pd), (ph, ph), (pw, pw), (0, 0)))
    OD = (D + 2 * pd - kD) // sd + 1
    OH = (H + 2 * ph - kH) // sh + 1
    OW = (W + 2 * pw - kW) // sw + 1

    # TODO(synk): fold this tap loop into the matmul kernel's K reduction to
    # avoid materializing the im2col buffer in HBM.
    cols = []
    for dz in range(kD):
        for dy in range(kH):
            for dx in range(kW):
                cols.append(xp[:,
                               dz:dz + (OD - 1) * sd + 1:sd,
                               dy:dy + (OH - 1) * sh + 1:sh,
                               dx:dx + (OW - 1) * sw + 1:sw, :])
    patches = cols[0] if len(cols) == 1 else jnp.concatenate(cols, axis=-1)
    Mrows = N * OD * OH * OW
    Kdim = kD * kH * kW * Cin

    res2d = None
    if residual is not None:
        res2d = residual.reshape(Mrows, -1)

    out = matmul_bias(patches.reshape(Mrows, Kdim), p['wm'], p['b'],
                      residual=res2d)
    return out.reshape(N, OD, OH, OW, -1)          # channels-last, no transpose


# ----------------------------------------------------------------------------
# Parameter init (deterministic, torch-like); conv weights pre-flattened (K, O)
# ----------------------------------------------------------------------------

def conv3d_params(key, cin, cout, k):
    k1, k2 = jax.random.split(key)
    fan_in = cin * k[0] * k[1] * k[2]
    bound = 1.0 / math.sqrt(fan_in)
    w = jax.random.uniform(k1, (cout, cin) + tuple(k), jnp.float32, -bound, bound)
    b = jax.random.uniform(k2, (cout,), jnp.float32, -bound, bound)
    wm = w.transpose(2, 3, 4, 1, 0).reshape(-1, cout)   # (taps*Cin, O)
    return {'wm': wm, 'b': b, 'k': tuple(k)}


def linear_params_t(key, cin, cout):
    bound = 1.0 / math.sqrt(cin)
    w = jax.random.uniform(key, (cout, cin), jnp.float32, -bound, bound)
    return w.T                                          # (cin, cout) for x @ w


def init_gn(c):
    return (jnp.ones((c,), jnp.float32), jnp.zeros((c,), jnp.float32))


def init_resblock_x(keys, cin, cout):
    # ResBlockX's norm2 is built with in_channels; requires cin == cout here.
    assert cin == cout
    return {
        'norm1': init_gn(cin),
        'conv1': conv3d_params(next(keys), cin, cout, (3, 3, 3)),
        'norm2': init_gn(cin),
        'conv2': conv3d_params(next(keys), cout, cout, (3, 3, 3)),
    }


def init_resblock_xy(keys, cin, cout):
    return {
        'resConv': conv3d_params(next(keys), cin, cout, (1, 1, 1)),
        'norm1': init_gn(cin),
        'conv1': conv3d_params(next(keys), cin, cout, (3, 3, 3)),
        'norm2': init_gn(cout),
        'conv2': conv3d_params(next(keys), cout, cout, (3, 3, 3)),
    }


def init_encoder_params(key, n_hiddens, downsample, image_channel,
                        num_groups, embedding_dim, heads=4, dim_head=32):
    n_times_downsample = np.array([int(math.log2(d)) for d in downsample])
    max_ds = int(n_times_downsample.max())
    channels = [n_hiddens * 2 ** i for i in range(max_ds)]
    channels = channels + [channels[-1]]

    keys = iter(jax.random.split(key, 256))
    params = {}
    params['conv_first'] = conv3d_params(next(keys), image_channel, n_hiddens,
                                         (3, 3, 3))

    blocks = []
    in_ch = channels[0]
    ntd = n_times_downsample.copy()
    for i in range(max_ds + 1):
        if i != 0:
            in_ch = channels[i - 1]
        out_ch = channels[i]
        stride = tuple(2 if d > 0 else 1 for d in ntd)
        blk = {}
        if in_ch != out_ch:
            blk['res1'] = init_resblock_xy(keys, in_ch, out_ch)
            blk['res1_type'] = 'xy'
        else:
            blk['res1'] = init_resblock_x(keys, in_ch, out_ch)
            blk['res1_type'] = 'x'
        blk['res2'] = init_resblock_x(keys, out_ch, out_ch)
        if i != max_ds:
            blk['down'] = conv3d_params(next(keys), out_ch, out_ch, (4, 4, 4))
            blk['down_stride'] = stride
        else:
            blk['down'] = None
            blk['down_stride'] = None
        blocks.append(blk)
        ntd = ntd - 1
    params['blocks'] = blocks

    hidden = heads * dim_head
    params['mid'] = {
        'res1': init_resblock_x(keys, out_ch, out_ch),
        'attn': {
            'norm': init_gn(out_ch),
            'to_qkv_w': linear_params_t(next(keys), out_ch, hidden * 3),
            'to_out': conv3d_params(next(keys), hidden, out_ch, (1, 1, 1)),
            'heads': heads,
            'dim_head': dim_head,
        },
        'res2': init_resblock_x(keys, out_ch, out_ch),
    }
    params['final'] = {
        'norm': init_gn(out_ch),
        'conv': conv3d_params(next(keys), out_ch, embedding_dim, (3, 3, 3)),
    }
    params['out_channels'] = out_ch
    return params


# ----------------------------------------------------------------------------
# Forward pass (mirrors the PyTorch module; channels-last, bf16 internally)
# ----------------------------------------------------------------------------

def resblock_x(x, p, num_groups):
    h = group_norm(x, *p['norm1'], num_groups, apply_silu=True)
    h = conv3d_cl(h, p['conv1'], stride=(1, 1, 1), padding=(1, 1, 1))
    h = group_norm(h, *p['norm2'], num_groups, apply_silu=True)
    # residual add fused into the conv2 matmul epilogue
    return conv3d_cl(h, p['conv2'], stride=(1, 1, 1), padding=(1, 1, 1),
                     residual=x)


def resblock_xy(x, p, num_groups):
    residual = conv3d_cl(x, p['resConv'], stride=(1, 1, 1), padding=(0, 0, 0))
    h = group_norm(x, *p['norm1'], num_groups, apply_silu=True)
    h = conv3d_cl(h, p['conv1'], stride=(1, 1, 1), padding=(1, 1, 1))
    h = group_norm(h, *p['norm2'], num_groups, apply_silu=True)
    return conv3d_cl(h, p['conv2'], stride=(1, 1, 1), padding=(1, 1, 1),
                     residual=residual)


def attention_block(x, p, num_groups):
    N, D, H, W, C = x.shape
    S = D * H * W
    heads, dim_head = p['heads'], p['dim_head']
    hidden = heads * dim_head
    xn = group_norm(x, *p['norm'], num_groups, apply_silu=False)
    # 'b c z x y -> b (z x y) c' is a free reshape in channels-last.
    qkv = matmul_bias(xn.reshape(N * S, C), p['to_qkv_w'])        # (N*S, 3*hidden)
    qkv = qkv.reshape(N, S, 3, heads, dim_head)
    q = jnp.transpose(qkv[:, :, 0], (0, 2, 1, 3))                 # (N, h, S, dh)
    k = jnp.transpose(qkv[:, :, 1], (0, 2, 1, 3))
    v = jnp.transpose(qkv[:, :, 2], (0, 2, 1, 3))
    out = fused_attention(q, k, v, dim_head ** (-0.5))            # (N, h, S, dh)
    out = jnp.transpose(out, (0, 2, 1, 3)).reshape(N, D, H, W, hidden)
    # to_out 1x1x1 conv with the residual (+ x) fused into its epilogue
    return conv3d_cl(out, p['to_out'], stride=(1, 1, 1), padding=(0, 0, 0),
                     residual=x)


def encoder_forward(params, x_ncdhw, num_groups, return_feature=True):
    # NCDHW only at the model boundary; NDHWC bf16 internally.
    h = jnp.transpose(x_ncdhw, (0, 2, 3, 4, 1))
    feature_list = []
    h = conv3d_cl(h, params['conv_first'], stride=(1, 1, 1), padding=(1, 1, 1))
    if return_feature:
        feature_list.append(jnp.transpose(h, (0, 4, 1, 2, 3)).astype(jnp.float32))
    for blk in params['blocks']:
        if blk['res1_type'] == 'xy':
            h = resblock_xy(h, blk['res1'], num_groups)
        else:
            h = resblock_x(h, blk['res1'], num_groups)
        h = resblock_x(h, blk['res2'], num_groups)
        if blk['down'] is not None:
            h = conv3d_cl(h, blk['down'], stride=blk['down_stride'],
                          padding=(1, 1, 1))
    if return_feature:
        feature_list.append(jnp.transpose(h, (0, 4, 1, 2, 3)).astype(jnp.float32))
    h = resblock_x(h, params['mid']['res1'], num_groups)
    h = attention_block(h, params['mid']['attn'], num_groups)
    h = resblock_x(h, params['mid']['res2'], num_groups)
    h = group_norm(h, *params['final']['norm'], num_groups, apply_silu=True)
    h = conv3d_cl(h, params['final']['conv'], stride=(1, 1, 1), padding=(1, 1, 1))
    h = jnp.transpose(h, (0, 4, 1, 2, 3)).astype(jnp.float32)
    if return_feature:
        return h, feature_list
    return h


# ----------------------------------------------------------------------------
# Main
# ----------------------------------------------------------------------------

if __name__ == "__main__":
    key = jax.random.PRNGKey(0)
    pkey, xkey = jax.random.split(key)

    n_hiddens = 8
    downsample = (4, 4, 4)     # -> max_ds = 2, two strided down-convs
    num_groups = 4
    embedding_dim = 8
    image_channel = 1

    params = init_encoder_params(pkey, n_hiddens, downsample, image_channel,
                                 num_groups, embedding_dim)

    x = jax.random.normal(xkey, (2, image_channel, 8, 8, 8), jnp.float32)

    h, feats = encoder_forward(params, x, num_groups, return_feature=True)
    jax.block_until_ready(h)
    jax.block_until_ready(feats)

    assert h.shape == (2, embedding_dim, 2, 2, 2), h.shape
    assert feats[0].shape == (2, n_hiddens, 8, 8, 8), feats[0].shape
    assert feats[1].shape == (2, params['out_channels'], 2, 2, 2), feats[1].shape
    assert bool(jnp.all(jnp.isfinite(h)))

    print("KERNEL_OK")
</pallas_src>

<mosaic_0001>
module attributes {stable_mosaic.version = 11 : i64} {
  func.func @kernel(%arg0: i32, %arg1: i32, %arg2: i32, %arg3: memref<512x27xbf16, #tpu.memory_space<vmem>>, %arg4: memref<27x8xbf16, #tpu.memory_space<vmem>>, %arg5: memref<1x8xf32, #tpu.memory_space<vmem>>, %arg6: memref<512x8xbf16, #tpu.memory_space<vmem>>, %arg7: memref<512x8xf32, #tpu.memory_space<vmem>>) attributes {dimension_semantics = [#tpu.dimension_semantics<parallel>, #tpu.dimension_semantics<parallel>, #tpu.dimension_semantics<arbitrary>], iteration_bounds = array<i64: 2, 1, 1>, scalar_prefetch = 0 : i64, scratch_operands = 1 : i64, tpu.core_type = #tpu.core_type<tc>, window_params = [{transform_indices = @transform_0, window_bounds = array<i64: 512, 27>}, {transform_indices = @transform_1, window_bounds = array<i64: 27, 8>}, {transform_indices = @transform_2, window_bounds = array<i64: 1, 8>}, {transform_indices = @transform_3, window_bounds = array<i64: 512, 8>}]} {
    %c0_i32 = arith.constant 0 : i32
    %0 = arith.cmpi eq, %arg2, %c0_i32 : i32
    %1 = arith.extui %0 : i1 to i32
    %c0_i32_0 = arith.constant 0 : i32
    %2 = arith.cmpi ne, %1, %c0_i32_0 : i32
    scf.if %2 {
      %cst_10 = arith.constant 0.000000e+00 : f32
      %12 = vector.broadcast %cst_10 : f32 to vector<512x8xf32>
      %c0_11 = arith.constant 0 : index
      %c0_12 = arith.constant 0 : index
      %13 = vector.load %arg7[%c0_11, %c0_12] : memref<512x8xf32, #tpu.memory_space<vmem>>, vector<512x8xf32>
      tpu.vector_store %arg7[%c0_11, %c0_12], %12 {strides = array<i32>} : memref<512x8xf32, #tpu.memory_space<vmem>>, vector<512x8xf32>,
    } else {
    }
    %c0 = arith.constant 0 : index
    %c0_1 = arith.constant 0 : index
    %3 = vector.load %arg7[%c0, %c0_1] : memref<512x8xf32, #tpu.memory_space<vmem>>, vector<512x8xf32>
    %c0_2 = arith.constant 0 : index
    %c0_3 = arith.constant 0 : index
    %4 = vector.load %arg3[%c0_2, %c0_3] : memref<512x27xbf16, #tpu.memory_space<vmem>>, vector<512x27xbf16>
    %c0_4 = arith.constant 0 : index
    %c0_5 = arith.constant 0 : index
    %5 = vector.load %arg4[%c0_4, %c0_5] : memref<27x8xbf16, #tpu.memory_space<vmem>>, vector<27x8xbf16>
    %cst = arith.constant dense<0.000000e+00> : vector<512x8xf32>
    %6 = tpu.matmul %4, %5, %cst {dimension_numbers = #tpu.dot_dimension_numbers<[1], [0], [0], [1], [0, 0, 1, 1], [], []>} : vector<512x27xbf16>, vector<27x8xbf16>, vector<512x8xf32> -> vector<512x8xf32>
    %7 = arith.addf %3, %6 : vector<512x8xf32>
    %c0_6 = arith.constant 0 : index
    %c0_7 = arith.constant 0 : index
    %8 = vector.load %arg7[%c0_6, %c0_7] : memref<512x8xf32, #tpu.memory_space<vmem>>, vector<512x8xf32>
    tpu.vector_store %arg7[%c0_6, %c0_7], %7 {strides = array<i32>} : memref<512x8xf32, #tpu.memory_space<vmem>>, vector<512x8xf32>,
    %c0_i32_8 = arith.constant 0 : i32
    %9 = arith.cmpi eq, %arg2, %c0_i32_8 : i32
    %10 = arith.extui %9 : i1 to i32
    %c0_i32_9 = arith.constant 0 : i32
    %11 = arith.cmpi ne, %10, %c0_i32_9 : i32
    scf.if %11 {
      %c0_10 = arith.constant 0 : index
      %c0_11 = arith.constant 0 : index
      %12 = vector.load %arg7[%c0_10, %c0_11] : memref<512x8xf32, #tpu.memory_space<vmem>>, vector<512x8xf32>
      %c0_12 = arith.constant 0 : index
      %c0_13 = arith.constant 0 : index
      %13 = vector.load %arg5[%c0_12, %c0_13] : memref<1x8xf32, #tpu.memory_space<vmem>>, vector<1x8xf32>
      %14 = vector.broadcast %13 : vector<1x8xf32> to vector<512x8xf32>
      %15 = arith.addf %12, %14 : vector<512x8xf32>
      %16 = arith.truncf %15 : vector<512x8xf32> to vector<512x8xbf16>
      %c0_14 = arith.constant 0 : index
      %c0_15 = arith.constant 0 : index
      %17 = vector.load %arg6[%c0_14, %c0_15] : memref<512x8xbf16, #tpu.memory_space<vmem>>, vector<512x8xbf16>
      tpu.vector_store %arg6[%c0_14, %c0_15], %16 {strides = array<i32>} : memref<512x8xbf16, #tpu.memory_space<vmem>>, vector<512x8xbf16>,
    } else {
    }
    return
  }
  func.func @transform_0(%arg0: i32, %arg1: i32, %arg2: i32) -> (i32, i32) {
    %c0_i32 = arith.constant 0 : i32
    return %arg0, %arg2 : i32, i32
  }
  func.func @transform_1(%arg0: i32, %arg1: i32, %arg2: i32) -> (i32, i32) {
    %c0_i32 = arith.constant 0 : i32
    return %arg2, %arg1 : i32, i32
  }
  func.func @transform_2(%arg0: i32, %arg1: i32, %arg2: i32) -> (i32, i32) {
    %c0_i32 = arith.constant 0 : i32
    %c0_i32_0 = arith.constant 0 : i32
    return %c0_i32, %arg1 : i32, i32
  }
  func.func @transform_3(%arg0: i32, %arg1: i32, %arg2: i32) -> (i32, i32) {
    %c0_i32 = arith.constant 0 : i32
    return %arg0, %arg1 : i32, i32
  }
}

</mosaic_0001>

<llo_original>
// kernel: tpu_custom_call.1
$region0: #{tpu_custom_call.1}
  #allocation0 [shape = 'u32[]', space=smem, size = 0x4, offset = 0x4, fixed_abs, tag = 'smem constant byte address 0x4 - core index']
  #allocation1 [shape = 'u32[144,128]{1,0:T(1,128)}', space=vmem, size = 0x12000, scoped, tag = 'internal scratch']
  #allocation2 [shape = 'f32[512,8]{1,0:T(8,128)}', space=vmem, size = 0x40000, scoped, tag = 'scratch operand']
  %s0 = inlined_call_operand.vmem [shape: bf16[1024,27], index: 0, kind: input, shape index: {}]
  %s1 = inlined_call_operand.vmem [shape: bf16[27,8], index: 1, kind: input, shape index: {}]
  %s2 = inlined_call_operand.vmem [shape: f32[1,8], index: 2, kind: input, shape index: {}]
  %s3 = inlined_call_operand.vmem [shape: bf16[1024,8], index: 3, kind: output, shape index: {}]
  %s4 = sld [smem:[#allocation0]]
  $region53: #{tpu_custom_call.1} parent=0
    _
  %s6 = ssub.s32 1, %s4
  %s7 = scalar_select 0, %s6, %s4
  loop: start=0, step=1, limit=4
  $region2: #{tpu_custom_call.1} parent=0 // loop_pre_header
    _
  $region3: #{tpu_custom_call.1} parent=0 // loop_header
    %s9 = sphi 0, %s13
    %p10 = scmp.ge.s32.totalorder %s9, 4
    %s16 = sphi 0, %s35
    %s17 = sphi 0, %s31
    %s18 = sphi 0, %s27
    %s19 = sphi 0, %s16
    %s20 = sphi 0, %s17
    %s21 = sphi 0, %s18
    %s22 = sphi 0, %s19
    %s23 = sphi 0, %s20
    %s24 = sphi 0, %s21
    %s40 = sphi 0, %s42
    %s43 = sphi 0, %s40
    %s44 = sphi 0, %s43
    %s60 = sphi 0, %s44
    %s68 = sphi 0, %s70
    %s71 = sphi 0, %s68
    %s72 = sphi 0, %s71
    %s88 = sphi 0, %s72
    %s94 = sphi 0, %s96
    %s97 = sphi 0, %s94
    %s98 = sphi 0, %s97
    %s114 = sphi 0, %s98
    %s122 = sphi 0, %s124
    %s125 = sphi 0, %s122
    %s126 = sphi 0, %s125
    %s142 = sphi 0, %s126
  $region4: #{tpu_custom_call.1} parent=0 // loop_header_branch
    %12 = sbr.rel (%p10) target = $region8
  $region5: #{tpu_custom_call.1} parent=0 // loop_body
    %s14 = ssub.s32 %s9, 1
    %s15 = ssub.s32 %s9, 2
    %s25 = sadd.s32 1, %s18
    %p26 = scmp.ge.s32.totalorder %s25, 1
    %s27 = scalar_select %p26, 0, %s25
    %s28 = sadd.s32 1, %s17
    %s29 = scalar_select %p26, %s28, %s17
    %p30 = scmp.ge.s32.totalorder %s29, 1
    %s31 = scalar_select %p30, 0, %s29
    %s32 = sadd.s32 1, %s16
    %s33 = scalar_select %p30, %s32, %s16
    %p34 = scmp.ge.s32.totalorder %s33, 2
    %s35 = scalar_select %p34, 0, %s33
    %s36 = ssub.s32 %s16, %s35
    %s37 = ssub.s32 %s18, %s27
    %s38 = sor.u32 %s36, %s37
    %p39 = scmp.eq.s32.totalorder %s38, 0
    %s41 = sadd.s32 %s40, 1
    %s42 = scalar_select %p39, %s40, %s41
    %p45 = pneg %p39
    %p46 = scmp.eq.s32.totalorder %s9, 1
    %p47 = por %p45, %p46
    %p48 = scmp.ne.s32.totalorder %s40, %s43
    %p49 = scmp.eq.s32.totalorder %s9, 0
    %p50 = por %p48, %p49
    %p51 = scmp.ne.s32.totalorder %s40, %s43
    %p52 = scmp.eq.s32.totalorder %s14, 1
    %p53 = por %p51, %p52
    %p54 = scmp.ne.s32.totalorder %s43, %s44
    %p55 = scmp.eq.s32.totalorder %s14, 0
    %p56 = por %p54, %p55
    %p57 = scmp.ne.s32.totalorder %s43, %s44
    %p58 = scmp.eq.s32.totalorder %s15, 1
    %p59 = por %p57, %p58
    %p61 = scmp.ne.s32.totalorder %s44, %s60
    %p62 = scmp.eq.s32.totalorder %s15, 0
    %p63 = por %p61, %p62
    %s64 = ssub.s32 %s18, %s27
    %s65 = ssub.s32 %s17, %s31
    %s66 = sor.u32 %s64, %s65
    %p67 = scmp.eq.s32.totalorder %s66, 0
    %s69 = sadd.s32 %s68, 1
    %s70 = scalar_select %p67, %s68, %s69
    %p73 = pneg %p67
    %p74 = scmp.eq.s32.totalorder %s9, 1
    %p75 = por %p73, %p74
    %p76 = scmp.ne.s32.totalorder %s68, %s71
    %p77 = scmp.eq.s32.totalorder %s9, 0
    %p78 = por %p76, %p77
    %p79 = scmp.ne.s32.totalorder %s68, %s71
    %p80 = scmp.eq.s32.totalorder %s14, 1
    %p81 = por %p79, %p80
    %p82 = scmp.ne.s32.totalorder %s71, %s72
    %p83 = scmp.eq.s32.totalorder %s14, 0
    %p84 = por %p82, %p83
    %p85 = scmp.ne.s32.totalorder %s71, %s72
    %p86 = scmp.eq.s32.totalorder %s15, 1
    %p87 = por %p85, %p86
    %p89 = scmp.ne.s32.totalorder %s72, %s88
    %p90 = scmp.eq.s32.totalorder %s15, 0
    %p91 = por %p89, %p90
    %s92 = ssub.s32 %s17, %s31
    %p93 = scmp.eq.s32.totalorder %s92, 0
    %s95 = sadd.s32 %s94, 1
    %s96 = scalar_select %p93, %s94, %s95
    %p99 = pneg %p93
    %p100 = scmp.eq.s32.totalorder %s9, 1
    %p101 = por %p99, %p100
    %p102 = scmp.ne.s32.totalorder %s94, %s97
    %p103 = scmp.eq.s32.totalorder %s9, 0
    %p104 = por %p102, %p103
    %p105 = scmp.ne.s32.totalorder %s94, %s97
    %p106 = scmp.eq.s32.totalorder %s14, 1
    %p107 = por %p105, %p106
    %p108 = scmp.ne.s32.totalorder %s97, %s98
    %p109 = scmp.eq.s32.totalorder %s14, 0
    %p110 = por %p108, %p109
    %p111 = scmp.ne.s32.totalorder %s97, %s98
    %p112 = scmp.eq.s32.totalorder %s15, 1
    %p113 = por %p111, %p112
    %p115 = scmp.ne.s32.totalorder %s98, %s114
    %p116 = scmp.eq.s32.totalorder %s15, 0
    %p117 = por %p115, %p116
    %s118 = ssub.s32 %s16, %s35
    %s119 = ssub.s32 %s17, %s31
    %s120 = sor.u32 %s118, %s119
    %p121 = scmp.eq.s32.totalorder %s120, 0
    %s123 = sadd.s32 %s122, 1
    %s124 = scalar_select %p121, %s122, %s123
    %p127 = pneg %p121
    %p128 = scmp.eq.s32.totalorder %s9, 1
    %p129 = por %p127, %p128
    %p130 = scmp.ne.s32.totalorder %s122, %s125
    %p131 = scmp.eq.s32.totalorder %s9, 0
    %p132 = por %p130, %p131
    %p133 = scmp.ne.s32.totalorder %s122, %s125
    %p134 = scmp.eq.s32.totalorder %s14, 1
    %p135 = por %p133, %p134
    %p136 = scmp.ne.s32.totalorder %s125, %s126
    %p137 = scmp.eq.s32.totalorder %s14, 0
    %p138 = por %p136, %p137
    %p139 = scmp.ne.s32.totalorder %s125, %s126
    %p140 = scmp.eq.s32.totalorder %s15, 1
    %p141 = por %p139, %p140
    %p143 = scmp.ne.s32.totalorder %s126, %s142
    %p144 = scmp.eq.s32.totalorder %s15, 0
    %p145 = por %p143, %p144
    %p146 = scmp.le.s32.totalorder 1, %s9
    %p147 = scmp.lt.s32.totalorder %s9, 3
    %p148 = pnand %p146, %p147
    %p149 = pneg %p148
    // Predicated region
    $region9: #{tpu_custom_call.1} parent=5 // pred_check
      _
    $region10: #{tpu_custom_call.1} parent=5 // pred_check_branch
      %151 = sbr.rel (%p148) target = $region12
    $region11: #{tpu_custom_call.1} parent=5 // pred_region
      %s152 = ssub.s32 %s9, 1
      // Predicated region
      $region13: #{tpu_custom_call.1} parent=11 // pred_check
        %p153 = pneg %p84
      $region14: #{tpu_custom_call.1} parent=11 // pred_check_branch
        %155 = sbr.rel (%p153) target = $region16
      $region15: #{tpu_custom_call.1} parent=11 // pred_region
        %s156 = smul.u32 4, %s21
        %p157 = scmp.lt.s32.totalorder %s156, 3
        %s158 = scalar_select %p157, %s156, 3
        %p159 = scmp.lt.s32.totalorder %s20, 0
        %s160 = scalar_select %p159, %s20, 0
        %s161 = sadd.s32 %s160, %s158
        %s162 = smul.addr %s161, 4
        %s163 = scalar_lea.vmem %s1, %s162
        %s164 = smul.u32 4, %s21
      $region16: #{tpu_custom_call.1} parent=11 // pred_fallthru
        _
      // Predicated region
      $region17: #{tpu_custom_call.1} parent=11 // pred_check
        %p165 = pneg %p110
      $region18: #{tpu_custom_call.1} parent=11 // pred_check_branch
        %167 = sbr.rel (%p165) target = $region20
      $region19: #{tpu_custom_call.1} parent=11 // pred_region
        %p168 = scmp.lt.s32.totalorder %s20, 0
        %s169 = scalar_select %p168, %s20, 0
        %s170 = scalar_lea.vmem %s2, %s169
      $region20: #{tpu_custom_call.1} parent=11 // pred_fallthru
        _
    $region12: #{tpu_custom_call.1} parent=5 // pred_fallthru
      _
    %p171 = scmp.lt.s32.totalorder %s9, 2
    // Predicated region
    $region21: #{tpu_custom_call.1} parent=5 // pred_check
      %p172 = pneg %p171
    $region22: #{tpu_custom_call.1} parent=5 // pred_check_branch
      %174 = sbr.rel (%p172) target = $region24
    $region23: #{tpu_custom_call.1} parent=5 // pred_region
      // Predicated region
      $region25: #{tpu_custom_call.1} parent=23 // pred_check
        %p175 = pneg %p50
      $region26: #{tpu_custom_call.1} parent=23 // pred_check_branch
        %177 = sbr.rel (%p175) target = $region28
      $region27: #{tpu_custom_call.1} parent=23 // pred_region
        %s178 = smul.u32 64, %s16
        %p179 = scmp.lt.s32.totalorder %s178, 127
        %s180 = scalar_select %p179, %s178, 127
        %p181 = scmp.lt.s32.totalorder %s18, 0
        %s182 = scalar_select %p181, %s18, 0
        %s183 = sadd.s32 %s182, %s180
        %s184 = smul.addr %s183, 4
        %s185 = scalar_lea.vmem %s0, %s184
        %s186 = smul.u32 64, %s16
      $region28: #{tpu_custom_call.1} parent=23 // pred_fallthru
        _
    $region24: #{tpu_custom_call.1} parent=5 // pred_fallthru
      _
    %p187 = scmp.le.s32.totalorder 1, %s9
    %p188 = scmp.lt.s32.totalorder %s9, 3
    %p189 = pnand %p187, %p188
    %p190 = pneg %p189
    // Predicated region
    $region29: #{tpu_custom_call.1} parent=5 // pred_check
      _
    $region30: #{tpu_custom_call.1} parent=5 // pred_check_branch
      %192 = sbr.rel (%p189) target = $region32
    $region31: #{tpu_custom_call.1} parent=5 // pred_region
      %s193 = ssub.s32 %s9, 1
      %s194 = smul.u32 64, %s19
      %p195 = scmp.lt.s32.totalorder %s194, 127
      %s196 = scalar_select %p195, %s194, 127
      %p197 = scmp.lt.s32.totalorder %s21, 0
      %s198 = scalar_select %p197, %s21, 0
      %s199 = sadd.s32 %s198, %s196
      %s200 = smul.addr %s199, 4
      %s201 = scalar_lea.vmem %s0, %s200
      %p202 = pneg %p56
      %p203 = pneg %p53
      %s204 = smul.u32 4, %s21
      %p205 = scmp.lt.s32.totalorder %s204, 3
      %s206 = scalar_select %p205, %s204, 3
      %p207 = scmp.lt.s32.totalorder %s20, 0
      %s208 = scalar_select %p207, %s20, 0
      %s209 = sadd.s32 %s208, %s206
      %s210 = smul.addr %s209, 4
      %s211 = scalar_lea.vmem %s1, %s210
      %p212 = pneg %p84
      %p213 = pneg %p81
      %p214 = scmp.lt.s32.totalorder %s20, 0
      %s215 = scalar_select %p214, %s20, 0
      %s216 = scalar_lea.vmem %s2, %s215
      %p217 = pneg %p110
      %p218 = pneg %p107
      %p219 = pneg %p138
      %p220 = pneg %p135
      %s221 = smul.u32 64, %s19
      %p222 = scmp.lt.s32.totalorder %s221, 127
      %s223 = scalar_select %p222, %s221, 127
      %p224 = scmp.lt.s32.totalorder %s20, 0
      %s225 = scalar_select %p224, %s20, 0
      %s226 = sadd.s32 %s225, %s223
      %s227 = smul.addr %s226, 4
      %s228 = scalar_lea.vmem %s3, %s227
      %s229 = smul.u32 64, %s19
      %p230 = scmp.lt.s32.totalorder %s229, 127
      %s231 = scalar_select %p230, %s229, 127
      %p232 = scmp.lt.s32.totalorder %s21, 0
      %s233 = scalar_select %p232, %s21, 0
      %s234 = sadd.s32 %s233, %s231
      %s235 = smul.addr %s234, 4
      %s236 = scalar_lea.vmem %s0, %s235
      %s237 = smul.u32 64, %s19
      %s238 = smul.u32 4, %s21
      %p239 = scmp.lt.s32.totalorder %s238, 3
      %s240 = scalar_select %p239, %s238, 3
      %p241 = scmp.lt.s32.totalorder %s20, 0
      %s242 = scalar_select %p241, %s20, 0
      %s243 = sadd.s32 %s242, %s240
      %s244 = smul.addr %s243, 4
      %s245 = scalar_lea.vmem %s1, %s244
      %s246 = smul.u32 4, %s21
      %p247 = scmp.lt.s32.totalorder %s20, 0
      %s248 = scalar_select %p247, %s20, 0
      %s249 = scalar_lea.vmem %s2, %s248
      %s250 = smul.u32 64, %s19
      %p251 = scmp.lt.s32.totalorder %s250, 127
      %s252 = scalar_select %p251, %s250, 127
      %p253 = scmp.lt.s32.totalorder %s20, 0
      %s254 = scalar_select %p253, %s20, 0
      %s255 = sadd.s32 %s254, %s252
      %s256 = smul.addr %s255, 4
      %s257 = scalar_lea.vmem %s3, %s256
      %s258 = smul.u32 64, %s19
      %p260 = scmp.eq.s32.totalorder %s21, 0
      // Predicated region
      $region33: #{tpu_custom_call.1} parent=31 // pred_check
        %p261 = pneg %p260
      $region34: #{tpu_custom_call.1} parent=31 // pred_check_branch
        %263 = sbr.rel (%p261) target = $region36
      $region35: #{tpu_custom_call.1} parent=31 // pred_region
        %vm264 = vcmask 64512
        %265 = vst.msk [vmem:[#allocation2] sm:$0xff] %vm264, 0.0
        %266 = vst.msk [vmem:[#allocation2 + $0x8] sm:$0xff] %vm264, 0.0
        %267 = vst.msk [vmem:[#allocation2 + $0x10] sm:$0xff] %vm264, 0.0
        %268 = vst.msk [vmem:[#allocation2 + $0x18] sm:$0xff] %vm264, 0.0
        %269 = vst.msk [vmem:[#allocation2 + $0x20] sm:$0xff] %vm264, 0.0
        %270 = vst.msk [vmem:[#allocation2 + $0x28] sm:$0xff] %vm264, 0.0
        %271 = vst.msk [vmem:[#allocation2 + $0x30] sm:$0xff] %vm264, 0.0
        %272 = vst.msk [vmem:[#allocation2 + $0x38] sm:$0xff] %vm264, 0.0
        %273 = vst.msk [vmem:[#allocation2 + $0x40] sm:$0xff] %vm264, 0.0
        %274 = vst.msk [vmem:[#allocation2 + $0x48] sm:$0xff] %vm264, 0.0
        %275 = vst.msk [vmem:[#allocation2 + $0x50] sm:$0xff] %vm264, 0.0
        %276 = vst.msk [vmem:[#allocation2 + $0x58] sm:$0xff] %vm264, 0.0
        %277 = vst.msk [vmem:[#allocation2 + $0x60] sm:$0xff] %vm264, 0.0
        %278 = vst.msk [vmem:[#allocation2 + $0x68] sm:$0xff] %vm264, 0.0
        %279 = vst.msk [vmem:[#allocation2 + $0x70] sm:$0xff] %vm264, 0.0
        %280 = vst.msk [vmem:[#allocation2 + $0x78] sm:$0xff] %vm264, 0.0
        %281 = vst.msk [vmem:[#allocation2 + $0x80] sm:$0xff] %vm264, 0.0
        %282 = vst.msk [vmem:[#allocation2 + $0x88] sm:$0xff] %vm264, 0.0
        %283 = vst.msk [vmem:[#allocation2 + $0x90] sm:$0xff] %vm264, 0.0
        %284 = vst.msk [vmem:[#allocation2 + $0x98] sm:$0xff] %vm264, 0.0
        %285 = vst.msk [vmem:[#allocation2 + $0xa0] sm:$0xff] %vm264, 0.0
        %286 = vst.msk [vmem:[#allocation2 + $0xa8] sm:$0xff] %vm264, 0.0
        %287 = vst.msk [vmem:[#allocation2 + $0xb0] sm:$0xff] %vm264, 0.0
        %288 = vst.msk [vmem:[#allocation2 + $0xb8] sm:$0xff] %vm264, 0.0
        %289 = vst.msk [vmem:[#allocation2 + $0xc0] sm:$0xff] %vm264, 0.0
        %290 = vst.msk [vmem:[#allocation2 + $0xc8] sm:$0xff] %vm264, 0.0
        %291 = vst.msk [vmem:[#allocation2 + $0xd0] sm:$0xff] %vm264, 0.0
        %292 = vst.msk [vmem:[#allocation2 + $0xd8] sm:$0xff] %vm264, 0.0
        %293 = vst.msk [vmem:[#allocation2 + $0xe0] sm:$0xff] %vm264, 0.0
        %294 = vst.msk [vmem:[#allocation2 + $0xe8] sm:$0xff] %vm264, 0.0
        %295 = vst.msk [vmem:[#allocation2 + $0xf0] sm:$0xff] %vm264, 0.0
        %296 = vst.msk [vmem:[#allocation2 + $0xf8] sm:$0xff] %vm264, 0.0
        %297 = vst.msk [vmem:[#allocation2 + $0x100] sm:$0xff] %vm264, 0.0
        %298 = vst.msk [vmem:[#allocation2 + $0x108] sm:$0xff] %vm264, 0.0
        %299 = vst.msk [vmem:[#allocation2 + $0x110] sm:$0xff] %vm264, 0.0
        %300 = vst.msk [vmem:[#allocation2 + $0x118] sm:$0xff] %vm264, 0.0
        %301 = vst.msk [vmem:[#allocation2 + $0x120] sm:$0xff] %vm264, 0.0
        %302 = vst.msk [vmem:[#allocation2 + $0x128] sm:$0xff] %vm264, 0.0
        %303 = vst.msk [vmem:[#allocation2 + $0x130] sm:$0xff] %vm264, 0.0
        %304 = vst.msk [vmem:[#allocation2 + $0x138] sm:$0xff] %vm264, 0.0
        %305 = vst.msk [vmem:[#allocation2 + $0x140] sm:$0xff] %vm264, 0.0
        %306 = vst.msk [vmem:[#allocation2 + $0x148] sm:$0xff] %vm264, 0.0
        %307 = vst.msk [vmem:[#allocation2 + $0x150] sm:$0xff] %vm264, 0.0
        %308 = vst.msk [vmem:[#allocation2 + $0x158] sm:$0xff] %vm264, 0.0
        %309 = vst.msk [vmem:[#allocation2 + $0x160] sm:$0xff] %vm264, 0.0
        %310 = vst.msk [vmem:[#allocation2 + $0x168] sm:$0xff] %vm264, 0.0
        %311 = vst.msk [vmem:[#allocation2 + $0x170] sm:$0xff] %vm264, 0.0
        %312 = vst.msk [vmem:[#allocation2 + $0x178] sm:$0xff] %vm264, 0.0
        %313 = vst.msk [vmem:[#allocation2 + $0x180] sm:$0xff] %vm264, 0.0
        %314 = vst.msk [vmem:[#allocation2 + $0x188] sm:$0xff] %vm264, 0.0
        %315 = vst.msk [vmem:[#allocation2 + $0x190] sm:$0xff] %vm264, 0.0
        %316 = vst.msk [vmem:[#allocation2 + $0x198] sm:$0xff] %vm264, 0.0
        %317 = vst.msk [vmem:[#allocation2 + $0x1a0] sm:$0xff] %vm264, 0.0
        %318 = vst.msk [vmem:[#allocation2 + $0x1a8] sm:$0xff] %vm264, 0.0
        %319 = vst.msk [vmem:[#allocation2 + $0x1b0] sm:$0xff] %vm264, 0.0
        %320 = vst.msk [vmem:[#allocation2 + $0x1b8] sm:$0xff] %vm264, 0.0
        %321 = vst.msk [vmem:[#allocation2 + $0x1c0] sm:$0xff] %vm264, 0.0
        %322 = vst.msk [vmem:[#allocation2 + $0x1c8] sm:$0xff] %vm264, 0.0
        %323 = vst.msk [vmem:[#allocation2 + $0x1d0] sm:$0xff] %vm264, 0.0
        %324 = vst.msk [vmem:[#allocation2 + $0x1d8] sm:$0xff] %vm264, 0.0
        %325 = vst.msk [vmem:[#allocation2 + $0x1e0] sm:$0xff] %vm264, 0.0
        %326 = vst.msk [vmem:[#allocation2 + $0x1e8] sm:$0xff] %vm264, 0.0
        %327 = vst.msk [vmem:[#allocation2 + $0x1f0] sm:$0xff] %vm264, 0.0
        %328 = vst.msk [vmem:[#allocation2 + $0x1f8] sm:$0xff] %vm264, 0.0
      $region36: #{tpu_custom_call.1} parent=31 // pred_fallthru
        _
      %v329 = vld [vmem:[#allocation2] sm:$0xff]
      %v330 = vld [vmem:[#allocation2 + $0x8] sm:$0xff]
      %v331 = vld [vmem:[#allocation2 + $0x10] sm:$0xff]
      %v332 = vld [vmem:[#allocation2 + $0x18] sm:$0xff]
      %v333 = vld [vmem:[#allocation2 + $0x20] sm:$0xff]
      %v334 = vld [vmem:[#allocation2 + $0x28] sm:$0xff]
      %v335 = vld [vmem:[#allocation2 + $0x30] sm:$0xff]
      %v336 = vld [vmem:[#allocation2 + $0x38] sm:$0xff]
      %v337 = vld [vmem:[#allocation2 + $0x40] sm:$0xff]
      %v338 = vld [vmem:[#allocation2 + $0x48] sm:$0xff]
      %v339 = vld [vmem:[#allocation2 + $0x50] sm:$0xff]
      %v340 = vld [vmem:[#allocation2 + $0x58] sm:$0xff]
      %v341 = vld [vmem:[#allocation2 + $0x60] sm:$0xff]
      %v342 = vld [vmem:[#allocation2 + $0x68] sm:$0xff]
      %v343 = vld [vmem:[#allocation2 + $0x70] sm:$0xff]
      %v344 = vld [vmem:[#allocation2 + $0x78] sm:$0xff]
      %v345 = vld [vmem:[#allocation2 + $0x80] sm:$0xff]
      %v346 = vld [vmem:[#allocation2 + $0x88] sm:$0xff]
      %v347 = vld [vmem:[#allocation2 + $0x90] sm:$0xff]
      %v348 = vld [vmem:[#allocation2 + $0x98] sm:$0xff]
      %v349 = vld [vmem:[#allocation2 + $0xa0] sm:$0xff]
      %v350 = vld [vmem:[#allocation2 + $0xa8] sm:$0xff]
      %v351 = vld [vmem:[#allocation2 + $0xb0] sm:$0xff]
      %v352 = vld [vmem:[#allocation2 + $0xb8] sm:$0xff]
      %v353 = vld [vmem:[#allocation2 + $0xc0] sm:$0xff]
      %v354 = vld [vmem:[#allocation2 + $0xc8] sm:$0xff]
      %v355 = vld [vmem:[#allocation2 + $0xd0] sm:$0xff]
      %v356 = vld [vmem:[#allocation2 + $0xd8] sm:$0xff]
      %v357 = vld [vmem:[#allocation2 + $0xe0] sm:$0xff]
      %v358 = vld [vmem:[#allocation2 + $0xe8] sm:$0xff]
      %v359 = vld [vmem:[#allocation2 + $0xf0] sm:$0xff]
      %v360 = vld [vmem:[#allocation2 + $0xf8] sm:$0xff]
      %v361 = vld [vmem:[#allocation2 + $0x100] sm:$0xff]
      %v362 = vld [vmem:[#allocation2 + $0x108] sm:$0xff]
      %v363 = vld [vmem:[#allocation2 + $0x110] sm:$0xff]
      %v364 = vld [vmem:[#allocation2 + $0x118] sm:$0xff]
      %v365 = vld [vmem:[#allocation2 + $0x120] sm:$0xff]
      %v366 = vld [vmem:[#allocation2 + $0x128] sm:$0xff]
      %v367 = vld [vmem:[#allocation2 + $0x130] sm:$0xff]
      %v368 = vld [vmem:[#allocation2 + $0x138] sm:$0xff]
      %v369 = vld [vmem:[#allocation2 + $0x140] sm:$0xff]
      %v370 = vld [vmem:[#allocation2 + $0x148] sm:$0xff]
      %v371 = vld [vmem:[#allocation2 + $0x150] sm:$0xff]
      %v372 = vld [vmem:[#allocation2 + $0x158] sm:$0xff]
      %v373 = vld [vmem:[#allocation2 + $0x160] sm:$0xff]
      %v374 = vld [vmem:[#allocation2 + $0x168] sm:$0xff]
      %v375 = vld [vmem:[#allocation2 + $0x170] sm:$0xff]
      %v376 = vld [vmem:[#allocation2 + $0x178] sm:$0xff]
      %v377 = vld [vmem:[#allocation2 + $0x180] sm:$0xff]
      %v378 = vld [vmem:[#allocation2 + $0x188] sm:$0xff]
      %v379 = vld [vmem:[#allocation2 + $0x190] sm:$0xff]
      %v380 = vld [vmem:[#allocation2 + $0x198] sm:$0xff]
      %v381 = vld [vmem:[#allocation2 + $0x1a0] sm:$0xff]
      %v382 = vld [vmem:[#allocation2 + $0x1a8] sm:$0xff]
      %v383 = vld [vmem:[#allocation2 + $0x1b0] sm:$0xff]
      %v384 = vld [vmem:[#allocation2 + $0x1b8] sm:$0xff]
      %v385 = vld [vmem:[#allocation2 + $0x1c0] sm:$0xff]
      %v386 = vld [vmem:[#allocation2 + $0x1c8] sm:$0xff]
      %v387 = vld [vmem:[#allocation2 + $0x1d0] sm:$0xff]
      %v388 = vld [vmem:[#allocation2 + $0x1d8] sm:$0xff]
      %v389 = vld [vmem:[#allocation2 + $0x1e0] sm:$0xff]
      %v390 = vld [vmem:[#allocation2 + $0x1e8] sm:$0xff]
      %v391 = vld [vmem:[#allocation2 + $0x1f0] sm:$0xff]
      %v392 = vld [vmem:[#allocation2 + $0x1f8] sm:$0xff]
      %v393 = vld [vmem:[%s236] sm:$0xf]
      %v394 = vld [vmem:[%s236 + $0x4] sm:$0xf]
      %v395 = vld [vmem:[%s236 + $0x8] sm:$0xf]
      %v396 = vld [vmem:[%s236 + $0xc] sm:$0xf]
      %v397 = vld [vmem:[%s236 + $0x10] sm:$0xf]
      %v398 = vld [vmem:[%s236 + $0x14] sm:$0xf]
      %v399 = vld [vmem:[%s236 + $0x18] sm:$0xf]
      %v400 = vld [vmem:[%s236 + $0x1c] sm:$0xf]
      %v401 = vld [vmem:[%s236 + $0x20] sm:$0xf]
      %v402 = vld [vmem:[%s236 + $0x24] sm:$0xf]
      %v403 = vld [vmem:[%s236 + $0x28] sm:$0xf]
      %v404 = vld [vmem:[%s236 + $0x2c] sm:$0xf]
      %v405 = vld [vmem:[%s236 + $0x30] sm:$0xf]
      %v406 = vld [vmem:[%s236 + $0x34] sm:$0xf]
      %v407 = vld [vmem:[%s236 + $0x38] sm:$0xf]
      %v408 = vld [vmem:[%s236 + $0x3c] sm:$0xf]
      %v409 = vld [vmem:[%s236 + $0x40] sm:$0xf]
      %v410 = vld [vmem:[%s236 + $0x44] sm:$0xf]
      %v411 = vld [vmem:[%s236 + $0x48] sm:$0xf]
      %v412 = vld [vmem:[%s236 + $0x4c] sm:$0xf]
      %v413 = vld [vmem:[%s236 + $0x50] sm:$0xf]
      %v414 = vld [vmem:[%s236 + $0x54] sm:$0xf]
      %v415 = vld [vmem:[%s236 + $0x58] sm:$0xf]
      %v416 = vld [vmem:[%s236 + $0x5c] sm:$0xf]
      %v417 = vld [vmem:[%s236 + $0x60] sm:$0xf]
      %v418 = vld [vmem:[%s236 + $0x64] sm:$0xf]
      %v419 = vld [vmem:[%s236 + $0x68] sm:$0xf]
      %v420 = vld [vmem:[%s236 + $0x6c] sm:$0xf]
      %v421 = vld [vmem:[%s236 + $0x70] sm:$0xf]
      %v422 = vld [vmem:[%s236 + $0x74] sm:$0xf]
      %v423 = vld [vmem:[%s236 + $0x78] sm:$0xf]
      %v424 = vld [vmem:[%s236 + $0x7c] sm:$0xf]
      %v425 = vld [vmem:[%s236 + $0x80] sm:$0xf]
      %v426 = vld [vmem:[%s236 + $0x84] sm:$0xf]
      %v427 = vld [vmem:[%s236 + $0x88] sm:$0xf]
      %v428 = vld [vmem:[%s236 + $0x8c] sm:$0xf]
      %v429 = vld [vmem:[%s236 + $0x90] sm:$0xf]
      %v430 = vld [vmem:[%s236 + $0x94] sm:$0xf]
      %v431 = vld [vmem:[%s236 + $0x98] sm:$0xf]
      %v432 = vld [vmem:[%s236 + $0x9c] sm:$0xf]
      %v433 = vld [vmem:[%s236 + $0xa0] sm:$0xf]
      %v434 = vld [vmem:[%s236 + $0xa4] sm:$0xf]
      %v435 = vld [vmem:[%s236 + $0xa8] sm:$0xf]
      %v436 = vld [vmem:[%s236 + $0xac] sm:$0xf]
      %v437 = vld [vmem:[%s236 + $0xb0] sm:$0xf]
      %v438 = vld [vmem:[%s236 + $0xb4] sm:$0xf]
      %v439 = vld [vmem:[%s236 + $0xb8] sm:$0xf]
      %v440 = vld [vmem:[%s236 + $0xbc] sm:$0xf]
      %v441 = vld [vmem:[%s236 + $0xc0] sm:$0xf]
      %v442 = vld [vmem:[%s236 + $0xc4] sm:$0xf]
      %v443 = vld [vmem:[%s236 + $0xc8] sm:$0xf]
      %v444 = vld [vmem:[%s236 + $0xcc] sm:$0xf]
      %v445 = vld [vmem:[%s236 + $0xd0] sm:$0xf]
      %v446 = vld [vmem:[%s236 + $0xd4] sm:$0xf]
      %v447 = vld [vmem:[%s236 + $0xd8] sm:$0xf]
      %v448 = vld [vmem:[%s236 + $0xdc] sm:$0xf]
      %v449 = vld [vmem:[%s236 + $0xe0] sm:$0xf]
      %v450 = vld [vmem:[%s236 + $0xe4] sm:$0xf]
      %v451 = vld [vmem:[%s236 + $0xe8] sm:$0xf]
      %v452 = vld [vmem:[%s236 + $0xec] sm:$0xf]
      %v453 = vld [vmem:[%s236 + $0xf0] sm:$0xf]
      %v454 = vld [vmem:[%s236 + $0xf4] sm:$0xf]
      %v455 = vld [vmem:[%s236 + $0xf8] sm:$0xf]
      %v456 = vld [vmem:[%s236 + $0xfc] sm:$0xf]
      %v457 = vld [vmem:[%s245] sm:$0xf]
      %v458 = vld [vmem:[%s245 + $0x4] sm:$0xf]
      %v459 = vld [vmem:[%s245 + $0x8] sm:$0xf]
      %v460 = vld [vmem:[%s245 + $0xc] sm:$0x3]
      %v525 = vunpack.c.l.b16 %v393
      %v526 = vunpack.c.l.b16 %v394
      %v527 = vunpack.c.l.b16 %v395
      %v528 = vunpack.c.l.b16 %v396
      %v529 = vunpack.c.l.b16 %v397
      %v530 = vunpack.c.l.b16 %v398
      %v531 = vunpack.c.l.b16 %v399
      %v532 = vunpack.c.l.b16 %v400
      %v533 = vunpack.c.l.b16 %v401
      %v534 = vunpack.c.l.b16 %v402
      %v535 = vunpack.c.l.b16 %v403
      %v536 = vunpack.c.l.b16 %v404
      %v537 = vunpack.c.l.b16 %v405
      %v538 = vunpack.c.l.b16 %v406
      %v539 = vunpack.c.l.b16 %v407
      %v540 = vunpack.c.l.b16 %v408
      %v541 = vunpack.c.l.b16 %v409
      %v542 = vunpack.c.l.b16 %v410
      %v543 = vunpack.c.l.b16 %v411
      %v544 = vunpack.c.l.b16 %v412
      %v545 = vunpack.c.l.b16 %v413
      %v546 = vunpack.c.l.b16 %v414
      %v547 = vunpack.c.l.b16 %v415
      %v548 = vunpack.c.l.b16 %v416
      %v549 = vunpack.c.l.b16 %v417
      %v550 = vunpack.c.l.b16 %v418
      %v551 = vunpack.c.l.b16 %v419
      %v552 = vunpack.c.l.b16 %v420
      %v553 = vunpack.c.l.b16 %v421
      %v554 = vunpack.c.l.b16 %v422
      %v555 = vunpack.c.l.b16 %v423
      %v556 = vunpack.c.l.b16 %v424
      %v557 = vunpack.c.l.b16 %v425
      %v558 = vunpack.c.l.b16 %v426
      %v559 = vunpack.c.l.b16 %v427
      %v560 = vunpack.c.l.b16 %v428
      %v561 = vunpack.c.l.b16 %v429
      %v562 = vunpack.c.l.b16 %v430
      %v563 = vunpack.c.l.b16 %v431
      %v564 = vunpack.c.l.b16 %v432
      %v565 = vunpack.c.l.b16 %v433
      %v566 = vunpack.c.l.b16 %v434
      %v567 = vunpack.c.l.b16 %v435
      %v568 = vunpack.c.l.b16 %v436
      %v569 = vunpack.c.l.b16 %v437
      %v570 = vunpack.c.l.b16 %v438
      %v571 = vunpack.c.l.b16 %v439
      %v572 = vunpack.c.l.b16 %v440
      %v573 = vunpack.c.l.b16 %v441
      %v574 = vunpack.c.l.b16 %v442
      %v575 = vunpack.c.l.b16 %v443
      %v576 = vunpack.c.l.b16 %v444
      %v577 = vunpack.c.l.b16 %v445
      %v578 = vunpack.c.l.b16 %v446
      %v579 = vunpack.c.l.b16 %v447
      %v580 = vunpack.c.l.b16 %v448
      %v581 = vunpack.c.l.b16 %v449
      %v582 = vunpack.c.l.b16 %v450
      %v583 = vunpack.c.l.b16 %v451
      %v584 = vunpack.c.l.b16 %v452
      %v585 = vunpack.c.l.b16 %v453
      %v586 = vunpack.c.l.b16 %v454
      %v587 = vunpack.c.l.b16 %v455
      %v588 = vunpack.c.l.b16 %v456
      %v589 = vpack.c.b16 %v526, %v525
      %v590 = vpack.c.b16 %v528, %v527
      %v591 = vpack.c.b16 %v530, %v529
      %v592 = vpack.c.b16 %v532, %v531
      %v593 = vpack.c.b16 %v534, %v533
      %v594 = vpack.c.b16 %v536, %v535
      %v595 = vpack.c.b16 %v538, %v537
      %v596 = vpack.c.b16 %v540, %v539
      %v597 = vpack.c.b16 %v542, %v541
      %v598 = vpack.c.b16 %v544, %v543
      %v599 = vpack.c.b16 %v546, %v545
      %v600 = vpack.c.b16 %v548, %v547
      %v601 = vpack.c.b16 %v550, %v549
      %v602 = vpack.c.b16 %v552, %v551
      %v603 = vpack.c.b16 %v554, %v553
      %v604 = vpack.c.b16 %v556, %v555
      %v605 = vpack.c.b16 %v558, %v557
      %v606 = vpack.c.b16 %v560, %v559
      %v607 = vpack.c.b16 %v562, %v561
      %v608 = vpack.c.b16 %v564, %v563
      %v609 = vpack.c.b16 %v566, %v565
      %v610 = vpack.c.b16 %v568, %v567
      %v611 = vpack.c.b16 %v570, %v569
      %v612 = vpack.c.b16 %v572, %v571
      %v613 = vpack.c.b16 %v574, %v573
      %v614 = vpack.c.b16 %v576, %v575
      %v615 = vpack.c.b16 %v578, %v577
      %v616 = vpack.c.b16 %v580, %v579
      %v617 = vpack.c.b16 %v582, %v581
      %v618 = vpack.c.b16 %v584, %v583
      %v619 = vpack.c.b16 %v586, %v585
      %v620 = vpack.c.b16 %v588, %v587
      %v625 = vunpack.c.l.b16 %v457
      %v626 = vunpack.c.l.b16 %v458
      %v627 = vunpack.c.l.b16 %v459
      %v628 = vunpack.c.l.b16 %v460
      %v629 = vpack.c.b16 %v626, %v625
      %v630 = vpack.c.b16 %v628, %v627
      %vm632 = vcmask 220160
      %v634 = vsel %vm632, %v589, 0
      %v637 = vsel %vm632, %v590, 0
      %v640 = vsel %vm632, %v591, 0
      %v643 = vsel %vm632, %v592, 0
      %v646 = vsel %vm632, %v593, 0
      %v649 = vsel %vm632, %v594, 0
      %v652 = vsel %vm632, %v595, 0
      %v655 = vsel %vm632, %v596, 0
      %v658 = vsel %vm632, %v597, 0
      %v661 = vsel %vm632, %v598, 0
      %v664 = vsel %vm632, %v599, 0
      %v667 = vsel %vm632, %v600, 0
      %v670 = vsel %vm632, %v601, 0
      %v673 = vsel %vm632, %v602, 0
      %v676 = vsel %vm632, %v603, 0
      %v679 = vsel %vm632, %v604, 0
      %v682 = vsel %vm632, %v605, 0
      %v685 = vsel %vm632, %v606, 0
      %v688 = vsel %vm632, %v607, 0
      %v691 = vsel %vm632, %v608, 0
      %v694 = vsel %vm632, %v609, 0
      %v697 = vsel %vm632, %v610, 0
      %v700 = vsel %vm632, %v611, 0
      %v703 = vsel %vm632, %v612, 0
      %v706 = vsel %vm632, %v613, 0
      %v709 = vsel %vm632, %v614, 0
      %v712 = vsel %vm632, %v615, 0
      %v715 = vsel %vm632, %v616, 0
      %v718 = vsel %vm632, %v617, 0
      %v721 = vsel %vm632, %v618, 0
      %v724 = vsel %vm632, %v619, 0
      %v727 = vsel %vm632, %v620, 0
      %vm729 = vcmask 1044480
      %vm730 = vcmask 1045504
      %v731 = vsel %vm729, 4294967295, 65535
      %v732 = vsel %vm730, %v731, 0
      %v734 = vand.u32 %v630, %v732
      %736 = vmatprep.subr.bf16.mxu0 0
      %737 = vmatpush1.bf16.msra.mxu0 %v629
      %738 = vmatprep.subr.bf16.mxu0 0
      %739 = vmatpush1.bf16.msra.mxu0 %v734
      %740 = vmatprep.subr.bf16.mxu0 0
      %741 = vmatpush1.bf16.msra.mxu0 0
      %742 = vmatprep.subr.bf16.mxu0 0
      %743 = vmatpush1.bf16.msra.mxu0 0
      %744 = vmatprep.subr.bf16.mxu0 0
      %745 = vmatpush1.bf16.msra.mxu0 0
      %746 = vmatprep.subr.bf16.mxu0 0
      %747 = vmatpush1.bf16.msra.mxu0 0
      %748 = vmatprep.subr.bf16.mxu0 0
      %749 = vmatpush1.bf16.msra.mxu0 0
      %750 = vmatprep.subr.bf16.mxu0 0
      %751 = vmatpush1.bf16.msra.mxu0 0
      %752 = vmatprep.subr.bf16.mxu0 0
      %753 = vmatpush1.bf16.msra.mxu0 0
      %754 = vmatprep.subr.bf16.mxu0 0
      %755 = vmatpush1.bf16.msra.mxu0 0
      %756 = vmatprep.subr.bf16.mxu0 0
      %757 = vmatpush1.bf16.msra.mxu0 0
      %758 = vmatprep.subr.bf16.mxu0 0
      %759 = vmatpush1.bf16.msra.mxu0 0
      %760 = vmatprep.subr.bf16.mxu0 0
      %761 = vmatpush1.bf16.msra.mxu0 0
      %762 = vmatprep.subr.bf16.mxu0 0
      %763 = vmatpush1.bf16.msra.mxu0 0
      %764 = vmatprep.subr.bf16.mxu0 0
      %765 = vmatpush1.bf16.msra.mxu0 0
      %766 = vmatprep.subr.bf16.mxu0 0
      %767 = vmatpush1.bf16.msra.mxu0 0
      %768 = vmatprep.mubr.bf16.mxu0 0
      %769 = vmatmul.mubr.bf16.gmra.mrb[0].mxu0 %v634
      %v770 = vpop.f32.mrb[0].mxu0
      %v771 = vadd.f32 0.0, %v770
      %v772 = vpop.f32.mrb[0].mxu0
      %v773 = vpop.f32.mrb[0].mxu0
      %v774 = vadd.f32 0.0, %v773
      %v775 = vpop.f32.mrb[0].mxu0
      %776 = vmatprep.mubr.bf16.mxu0 0
      %777 = vmatmul.mubr.bf16.gmra.mrb[0].mxu0 %v637
      %v778 = vpop.f32.mrb[0].mxu0
      %v779 = vadd.f32 0.0, %v778
      %v780 = vpop.f32.mrb[0].mxu0
      %v781 = vpop.f32.mrb[0].mxu0
      %v782 = vadd.f32 0.0, %v781
      %v783 = vpop.f32.mrb[0].mxu0
      %784 = vmatprep.mubr.bf16.mxu0 0
      %785 = vmatmul.mubr.bf16.gmra.mrb[0].mxu0 %v640
      %v786 = vpop.f32.mrb[0].mxu0
      %v787 = vadd.f32 0.0, %v786
      %v788 = vpop.f32.mrb[0].mxu0
      %v789 = vpop.f32.mrb[0].mxu0
      %v790 = vadd.f32 0.0, %v789
      %v791 = vpop.f32.mrb[0].mxu0
      %792 = vmatprep.mubr.bf16.mxu0 0
      %793 = vmatmul.mubr.bf16.gmra.mrb[0].mxu0 %v643
      %v794 = vpop.f32.mrb[0].mxu0
      %v795 = vadd.f32 0.0, %v794
      %v796 = vpop.f32.mrb[0].mxu0
      %v797 = vpop.f32.mrb[0].mxu0
      %v798 = vadd.f32 0.0, %v797
      %v799 = vpop.f32.mrb[0].mxu0
      %800 = vmatprep.mubr.bf16.mxu0 0
      %801 = vmatmul.mubr.bf16.gmra.mrb[0].mxu0 %v646
      %v802 = vpop.f32.mrb[0].mxu0
      %v803 = vadd.f32 0.0, %v802
      %v804 = vpop.f32.mrb[0].mxu0
      %v805 = vpop.f32.mrb[0].mxu0
      %v806 = vadd.f32 0.0, %v805
      %v807 = vpop.f32.mrb[0].mxu0
      %808 = vmatprep.mubr.bf16.mxu0 0
      %809 = vmatmul.mubr.bf16.gmra.mrb[0].mxu0 %v649
      %v810 = vpop.f32.mrb[0].mxu0
      %v811 = vadd.f32 0.0, %v810
      %v812 = vpop.f32.mrb[0].mxu0
      %v813 = vpop.f32.mrb[0].mxu0
      %v814 = vadd.f32 0.0, %v813
      %v815 = vpop.f32.mrb[0].mxu0
      %816 = vmatprep.mubr.bf16.mxu0 0
      %817 = vmatmul.mubr.bf16.gmra.mrb[0].mxu0 %v652
      %v818 = vpop.f32.mrb[0].mxu0
      %v819 = vadd.f32 0.0, %v818
      %v820 = vpop.f32.mrb[0].mxu0
      %v821 = vpop.f32.mrb[0].mxu0
      %v822 = vadd.f32 0.0, %v821
      %v823 = vpop.f32.mrb[0].mxu0
      %824 = vmatprep.mubr.bf16.mxu0 0
      %825 = vmatmul.mubr.bf16.gmra.mrb[0].mxu0 %v655
      %v826 = vpop.f32.mrb[0].mxu0
      %v827 = vadd.f32 0.0, %v826
      %v828 = vpop.f32.mrb[0].mxu0
      %v829 = vpop.f32.mrb[0].mxu0
      %v830 = vadd.f32 0.0, %v829
      %v831 = vpop.f32.mrb[0].mxu0
      %832 = vmatprep.mubr.bf16.mxu0 0
      %833 = vmatmul.mubr.bf16.gmra.mrb[0].mxu0 %v658
      %v834 = vpop.f32.mrb[0].mxu0
      %v835 = vadd.f32 0.0, %v834
      %v836 = vpop.f32.mrb[0].mxu0
      %v837 = vpop.f32.mrb[0].mxu0
      %v838 = vadd.f32 0.0, %v837
      %v839 = vpop.f32.mrb[0].mxu0
      %840 = vmatprep.mubr.bf16.mxu0 0
      %841 = vmatmul.mubr.bf16.gmra.mrb[0].mxu0 %v661
      %v842 = vpop.f32.mrb[0].mxu0
      %v843 = vadd.f32 0.0, %v842
      %v844 = vpop.f32.mrb[0].mxu0
      %v845 = vpop.f32.mrb[0].mxu0
      %v846 = vadd.f32 0.0, %v845
      %v847 = vpop.f32.mrb[0].mxu0
      %848 = vmatprep.mubr.bf16.mxu0 0
      %849 = vmatmul.mubr.bf16.gmra.mrb[0].mxu0 %v664
      %v850 = vpop.f32.mrb[0].mxu0
      %v851 = vadd.f32 0.0, %v850
      %v852 = vpop.f32.mrb[0].mxu0
      %v853 = vpop.f32.mrb[0].mxu0
      %v854 = vadd.f32 0.0, %v853
      %v855 = vpop.f32.mrb[0].mxu0
      %856 = vmatprep.mubr.bf16.mxu0 0
      %857 = vmatmul.mubr.bf16.gmra.mrb[0].mxu0 %v667
      %v858 = vpop.f32.mrb[0].mxu0
      %v859 = vadd.f32 0.0, %v858
      %v860 = vpop.f32.mrb[0].mxu0
      %v861 = vpop.f32.mrb[0].mxu0
      %v862 = vadd.f32 0.0, %v861
      %v863 = vpop.f32.mrb[0].mxu0
      %864 = vmatprep.mubr.bf16.mxu0 0
      %865 = vmatmul.mubr.bf16.gmra.mrb[0].mxu0 %v670
      %v866 = vpop.f32.mrb[0].mxu0
      %v867 = vadd.f32 0.0, %v866
      %v868 = vpop.f32.mrb[0].mxu0
      %v869 = vpop.f32.mrb[0].mxu0
      %v870 = vadd.f32 0.0, %v869
      %v871 = vpop.f32.mrb[0].mxu0
      %872 = vmatprep.mubr.bf16.mxu0 0
      %873 = vmatmul.mubr.bf16.gmra.mrb[0].mxu0 %v673
      %v874 = vpop.f32.mrb[0].mxu0
      %v875 = vadd.f32 0.0, %v874
      %v876 = vpop.f32.mrb[0].mxu0
      %v877 = vpop.f32.mrb[0].mxu0
      %v878 = vadd.f32 0.0, %v877
      %v879 = vpop.f32.mrb[0].mxu0
      %880 = vmatprep.mubr.bf16.mxu0 0
      %881 = vmatmul.mubr.bf16.gmra.mrb[0].mxu0 %v676
      %v882 = vpop.f32.mrb[0].mxu0
      %v883 = vadd.f32 0.0, %v882
      %v884 = vpop.f32.mrb[0].mxu0
      %v885 = vpop.f32.mrb[0].mxu0
      %v886 = vadd.f32 0.0, %v885
      %v887 = vpop.f32.mrb[0].mxu0
      %888 = vmatprep.mubr.bf16.mxu0 0
      %889 = vmatmul.mubr.bf16.gmra.mrb[0].mxu0 %v679
      %v890 = vpop.f32.mrb[0].mxu0
      %v891 = vadd.f32 0.0, %v890
      %v892 = vpop.f32.mrb[0].mxu0
      %v893 = vpop.f32.mrb[0].mxu0
      %v894 = vadd.f32 0.0, %v893
      %v895 = vpop.f32.mrb[0].mxu0
      %896 = vmatprep.mubr.bf16.mxu0 0
      %897 = vmatmul.mubr.bf16.gmra.mrb[0].mxu0 %v682
      %v898 = vpop.f32.mrb[0].mxu0
      %v899 = vadd.f32 0.0, %v898
      %v900 = vpop.f32.mrb[0].mxu0
      %v901 = vpop.f32.mrb[0].mxu0
      %v902 = vadd.f32 0.0, %v901
      %v903 = vpop.f32.mrb[0].mxu0
      %904 = vmatprep.mubr.bf16.mxu0 0
      %905 = vmatmul.mubr.bf16.gmra.mrb[0].mxu0 %v685
      %v906 = vpop.f32.mrb[0].mxu0
      %v907 = vadd.f32 0.0, %v906
      %v908 = vpop.f32.mrb[0].mxu0
      %v909 = vpop.f32.mrb[0].mxu0
      %v910 = vadd.f32 0.0, %v909
      %v911 = vpop.f32.mrb[0].mxu0
      %912 = vmatprep.mubr.bf16.mxu0 0
      %913 = vmatmul.mubr.bf16.gmra.mrb[0].mxu0 %v688
      %v914 = vpop.f32.mrb[0].mxu0
      %v915 = vadd.f32 0.0, %v914
      %v916 = vpop.f32.mrb[0].mxu0
      %v917 = vpop.f32.mrb[0].mxu0
      %v918 = vadd.f32 0.0, %v917
      %v919 = vpop.f32.mrb[0].mxu0
      %920 = vmatprep.mubr.bf16.mxu0 0
      %921 = vmatmul.mubr.bf16.gmra.mrb[0].mxu0 %v691
      %v922 = vpop.f32.mrb[0].mxu0
      %v923 = vadd.f32 0.0, %v922
      %v924 = vpop.f32.mrb[0].mxu0
      %v925 = vpop.f32.mrb[0].mxu0
      %v926 = vadd.f32 0.0, %v925
      %v927 = vpop.f32.mrb[0].mxu0
      %928 = vmatprep.mubr.bf16.mxu0 0
      %929 = vmatmul.mubr.bf16.gmra.mrb[0].mxu0 %v694
      %v930 = vpop.f32.mrb[0].mxu0
      %v931 = vadd.f32 0.0, %v930
      %v932 = vpop.f32.mrb[0].mxu0
      %v933 = vpop.f32.mrb[0].mxu0
      %v934 = vadd.f32 0.0, %v933
      %v935 = vpop.f32.mrb[0].mxu0
      %936 = vmatprep.mubr.bf16.mxu0 0
      %937 = vmatmul.mubr.bf16.gmra.mrb[0].mxu0 %v697
      %v938 = vpop.f32.mrb[0].mxu0
      %v939 = vadd.f32 0.0, %v938
      %v940 = vpop.f32.mrb[0].mxu0
      %v941 = vpop.f32.mrb[0].mxu0
      %v942 = vadd.f32 0.0, %v941
      %v943 = vpop.f32.mrb[0].mxu0
      %944 = vmatprep.mubr.bf16.mxu0 0
      %945 = vmatmul.mubr.bf16.gmra.mrb[0].mxu0 %v700
      %v946 = vpop.f32.mrb[0].mxu0
      %v947 = vadd.f32 0.0, %v946
      %v948 = vpop.f32.mrb[0].mxu0
      %v949 = vpop.f32.mrb[0].mxu0
      %v950 = vadd.f32 0.0, %v949
      %v951 = vpop.f32.mrb[0].mxu0
      %952 = vmatprep.mubr.bf16.mxu0 0
      %953 = vmatmul.mubr.bf16.gmra.mrb[0].mxu0 %v703
      %v954 = vpop.f32.mrb[0].mxu0
      %v955 = vadd.f32 0.0, %v954
      %v956 = vpop.f32.mrb[0].mxu0
      %v957 = vpop.f32.mrb[0].mxu0
      %v958 = vadd.f32 0.0, %v957
      %v959 = vpop.f32.mrb[0].mxu0
      %960 = vmatprep.mubr.bf16.mxu0 0
      %961 = vmatmul.mubr.bf16.gmra.mrb[0].mxu0 %v706
      %v962 = vpop.f32.mrb[0].mxu0
      %v963 = vadd.f32 0.0, %v962
      %v964 = vpop.f32.mrb[0].mxu0
      %v965 = vpop.f32.mrb[0].mxu0
      %v966 = vadd.f32 0.0, %v965
      %v967 = vpop.f32.mrb[0].mxu0
      %968 = vmatprep.mubr.bf16.mxu0 0
      %969 = vmatmul.mubr.bf16.gmra.mrb[0].mxu0 %v709
      %v970 = vpop.f32.mrb[0].mxu0
      %v971 = vadd.f32 0.0, %v970
      %v972 = vpop.f32.mrb[0].mxu0
      %v973 = vpop.f32.mrb[0].mxu0
      %v974 = vadd.f32 0.0, %v973
      %v975 = vpop.f32.mrb[0].mxu0
      %976 = vmatprep.mubr.bf16.mxu0 0
      %977 = vmatmul.mubr.bf16.gmra.mrb[0].mxu0 %v712
      %v978 = vpop.f32.mrb[0].mxu0
      %v979 = vadd.f32 0.0, %v978
      %v980 = vpop.f32.mrb[0].mxu0
      %v981 = vpop.f32.mrb[0].mxu0
      %v982 = vadd.f32 0.0, %v981
      %v983 = vpop.f32.mrb[0].mxu0
      %984 = vmatprep.mubr.bf16.mxu0 0
      %985 = vmatmul.mubr.bf16.gmra.mrb[0].mxu0 %v715
      %v986 = vpop.f32.mrb[0].mxu0
      %v987 = vadd.f32 0.0, %v986
      %v988 = vpop.f32.mrb[0].mxu0
      %v989 = vpop.f32.mrb[0].mxu0
      %v990 = vadd.f32 0.0, %v989
      %v991 = vpop.f32.mrb[0].mxu0
      %992 = vmatprep.mubr.bf16.mxu0 0
      %993 = vmatmul.mubr.bf16.gmra.mrb[0].mxu0 %v718
      %v994 = vpop.f32.mrb[0].mxu0
      %v995 = vadd.f32 0.0, %v994
      %v996 = vpop.f32.mrb[0].mxu0
      %v997 = vpop.f32.mrb[0].mxu0
      %v998 = vadd.f32 0.0, %v997
      %v999 = vpop.f32.mrb[0].mxu0
      %1000 = vmatprep.mubr.bf16.mxu0 0
      %1001 = vmatmul.mubr.bf16.gmra.mrb[0].mxu0 %v721
      %v1002 = vpop.f32.mrb[0].mxu0
      %v1003 = vadd.f32 0.0, %v1002
      %v1004 = vpop.f32.mrb[0].mxu0
      %v1005 = vpop.f32.mrb[0].mxu0
      %v1006 = vadd.f32 0.0, %v1005
      %v1007 = vpop.f32.mrb[0].mxu0
      %1008 = vmatprep.mubr.bf16.mxu0 0
      %1009 = vmatmul.mubr.bf16.gmra.mrb[0].mxu0 %v724
      %v1010 = vpop.f32.mrb[0].mxu0
      %v1011 = vadd.f32 0.0, %v1010
      %v1012 = vpop.f32.mrb[0].mxu0
      %v1013 = vpop.f32.mrb[0].mxu0
      %v1014 = vadd.f32 0.0, %v1013
      %v1015 = vpop.f32.mrb[0].mxu0
      %1016 = vmatprep.mubr.bf16.mxu0 0
      %1017 = vmatmul.mubr.bf16.gmra.mrb[0].mxu0 %v727
      %v1018 = vpop.f32.mrb[0].mxu0
      %v1019 = vadd.f32 0.0, %v1018
      %v1020 = vpop.f32.mrb[0].mxu0
      %v1021 = vpop.f32.mrb[0].mxu0
      %v1022 = vadd.f32 0.0, %v1021
      %v1023 = vpop.f32.mrb[0].mxu0
      %1024 = vdwg.mxu0
      %v1025 = vadd.f32 %v329, %v771
      %v1026 = vadd.f32 %v330, %v774
      %v1027 = vadd.f32 %v331, %v779
      %v1028 = vadd.f32 %v332, %v782
      %v1029 = vadd.f32 %v333, %v787
      %v1030 = vadd.f32 %v334, %v790
      %v1031 = vadd.f32 %v335, %v795
      %v1032 = vadd.f32 %v336, %v798
      %v1033 = vadd.f32 %v337, %v803
      %v1034 = vadd.f32 %v338, %v806
      %v1035 = vadd.f32 %v339, %v811
      %v1036 = vadd.f32 %v340, %v814
      %v1037 = vadd.f32 %v341, %v819
      %v1038 = vadd.f32 %v342, %v822
      %v1039 = vadd.f32 %v343, %v827
      %v1040 = vadd.f32 %v344, %v830
      %v1041 = vadd.f32 %v345, %v835
      %v1042 = vadd.f32 %v346, %v838
      %v1043 = vadd.f32 %v347, %v843
      %v1044 = vadd.f32 %v348, %v846
      %v1045 = vadd.f32 %v349, %v851
      %v1046 = vadd.f32 %v350, %v854
      %v1047 = vadd.f32 %v351, %v859
      %v1048 = vadd.f32 %v352, %v862
      %v1049 = vadd.f32 %v353, %v867
      %v1050 = vadd.f32 %v354, %v870
      %v1051 = vadd.f32 %v355, %v875
      %v1052 = vadd.f32 %v356, %v878
      %v1053 = vadd.f32 %v357, %v883
      %v1054 = vadd.f32 %v358, %v886
      %v1055 = vadd.f32 %v359, %v891
      %v1056 = vadd.f32 %v360, %v894
      %v1057 = vadd.f32 %v361, %v899
      %v1058 = vadd.f32 %v362, %v902
      %v1059 = vadd.f32 %v363, %v907
      %v1060 = vadd.f32 %v364, %v910
      %v1061 = vadd.f32 %v365, %v915
      %v1062 = vadd.f32 %v366, %v918
      %v1063 = vadd.f32 %v367, %v923
      %v1064 = vadd.f32 %v368, %v926
      %v1065 = vadd.f32 %v369, %v931
      %v1066 = vadd.f32 %v370, %v934
      %v1067 = vadd.f32 %v371, %v939
      %v1068 = vadd.f32 %v372, %v942
      %v1069 = vadd.f32 %v373, %v947
      %v1070 = vadd.f32 %v374, %v950
      %v1071 = vadd.f32 %v375, %v955
      %v1072 = vadd.f32 %v376, %v958
      %v1073 = vadd.f32 %v377, %v963
      %v1074 = vadd.f32 %v378, %v966
      %v1075 = vadd.f32 %v379, %v971
      %v1076 = vadd.f32 %v380, %v974
      %v1077 = vadd.f32 %v381, %v979
      %v1078 = vadd.f32 %v382, %v982
      %v1079 = vadd.f32 %v383, %v987
      %v1080 = vadd.f32 %v384, %v990
      %v1081 = vadd.f32 %v385, %v995
      %v1082 = vadd.f32 %v386, %v998
      %v1083 = vadd.f32 %v387, %v1003
      %v1084 = vadd.f32 %v388, %v1006
      %v1085 = vadd.f32 %v389, %v1011
      %v1086 = vadd.f32 %v390, %v1014
      %v1087 = vadd.f32 %v391, %v1019
      %v1088 = vadd.f32 %v392, %v1022
      %vm1089 = vcmask 64512
      %1090 = vst.msk [vmem:[#allocation2] sm:$0xff] %vm1089, %v1025
      %1091 = vst.msk [vmem:[#allocation2 + $0x8] sm:$0xff] %vm1089, %v1026
      %1092 = vst.msk [vmem:[#allocation2 + $0x10] sm:$0xff] %vm1089, %v1027
      %1093 = vst.msk [vmem:[#allocation2 + $0x18] sm:$0xff] %vm1089, %v1028
      %1094 = vst.msk [vmem:[#allocation2 + $0x20] sm:$0xff] %vm1089, %v1029
      %1095 = vst.msk [vmem:[#allocation2 + $0x28] sm:$0xff] %vm1089, %v1030
      %1096 = vst.msk [vmem:[#allocation2 + $0x30] sm:$0xff] %vm1089, %v1031
      %1097 = vst.msk [vmem:[#allocation2 + $0x38] sm:$0xff] %vm1089, %v1032
      %1098 = vst.msk [vmem:[#allocation2 + $0x40] sm:$0xff] %vm1089, %v1033
      %1099 = vst.msk [vmem:[#allocation2 + $0x48] sm:$0xff] %vm1089, %v1034
      %1100 = vst.msk [vmem:[#allocation2 + $0x50] sm:$0xff] %vm1089, %v1035
      %1101 = vst.msk [vmem:[#allocation2 + $0x58] sm:$0xff] %vm1089, %v1036
      %1102 = vst.msk [vmem:[#allocation2 + $0x60] sm:$0xff] %vm1089, %v1037
      %1103 = vst.msk [vmem:[#allocation2 + $0x68] sm:$0xff] %vm1089, %v1038
      %1104 = vst.msk [vmem:[#allocation2 + $0x70] sm:$0xff] %vm1089, %v1039
      %1105 = vst.msk [vmem:[#allocation2 + $0x78] sm:$0xff] %vm1089, %v1040
      %1106 = vst.msk [vmem:[#allocation2 + $0x80] sm:$0xff] %vm1089, %v1041
      %1107 = vst.msk [vmem:[#allocation2 + $0x88] sm:$0xff] %vm1089, %v1042
      %1108 = vst.msk [vmem:[#allocation2 + $0x90] sm:$0xff] %vm1089, %v1043
      %1109 = vst.msk [vmem:[#allocation2 + $0x98] sm:$0xff] %vm1089, %v1044
      %1110 = vst.msk [vmem:[#allocation2 + $0xa0] sm:$0xff] %vm1089, %v1045
      %1111 = vst.msk [vmem:[#allocation2 + $0xa8] sm:$0xff] %vm1089, %v1046
      %1112 = vst.msk [vmem:[#allocation2 + $0xb0] sm:$0xff] %vm1089, %v1047
      %1113 = vst.msk [vmem:[#allocation2 + $0xb8] sm:$0xff] %vm1089, %v1048
      %1114 = vst.msk [vmem:[#allocation2 + $0xc0] sm:$0xff] %vm1089, %v1049
      %1115 = vst.msk [vmem:[#allocation2 + $0xc8] sm:$0xff] %vm1089, %v1050
      %1116 = vst.msk [vmem:[#allocation2 + $0xd0] sm:$0xff] %vm1089, %v1051
      %1117 = vst.msk [vmem:[#allocation2 + $0xd8] sm:$0xff] %vm1089, %v1052
      %1118 = vst.msk [vmem:[#allocation2 + $0xe0] sm:$0xff] %vm1089, %v1053
      %1119 = vst.msk [vmem:[#allocation2 + $0xe8] sm:$0xff] %vm1089, %v1054
      %1120 = vst.msk [vmem:[#allocation2 + $0xf0] sm:$0xff] %vm1089, %v1055
      %1121 = vst.msk [vmem:[#allocation2 + $0xf8] sm:$0xff] %vm1089, %v1056
      %1122 = vst.msk [vmem:[#allocation2 + $0x100] sm:$0xff] %vm1089, %v1057
      %1123 = vst.msk [vmem:[#allocation2 + $0x108] sm:$0xff] %vm1089, %v1058
      %1124 = vst.msk [vmem:[#allocation2 + $0x110] sm:$0xff] %vm1089, %v1059
      %1125 = vst.msk [vmem:[#allocation2 + $0x118] sm:$0xff] %vm1089, %v1060
      %1126 = vst.msk [vmem:[#allocation2 + $0x120] sm:$0xff] %vm1089, %v1061
      %1127 = vst.msk [vmem:[#allocation2 + $0x128] sm:$0xff] %vm1089, %v1062
      %1128 = vst.msk [vmem:[#allocation2 + $0x130] sm:$0xff] %vm1089, %v1063
      %1129 = vst.msk [vmem:[#allocation2 + $0x138] sm:$0xff] %vm1089, %v1064
      %1130 = vst.msk [vmem:[#allocation2 + $0x140] sm:$0xff] %vm1089, %v1065
      %1131 = vst.msk [vmem:[#allocation2 + $0x148] sm:$0xff] %vm1089, %v1066
      %1132 = vst.msk [vmem:[#allocation2 + $0x150] sm:$0xff] %vm1089, %v1067
      %1133 = vst.msk [vmem:[#allocation2 + $0x158] sm:$0xff] %vm1089, %v1068
      %1134 = vst.msk [vmem:[#allocation2 + $0x160] sm:$0xff] %vm1089, %v1069
      %1135 = vst.msk [vmem:[#allocation2 + $0x168] sm:$0xff] %vm1089, %v1070
      %1136 = vst.msk [vmem:[#allocation2 + $0x170] sm:$0xff] %vm1089, %v1071
      %1137 = vst.msk [vmem:[#allocation2 + $0x178] sm:$0xff] %vm1089, %v1072
      %1138 = vst.msk [vmem:[#allocation2 + $0x180] sm:$0xff] %vm1089, %v1073
      %1139 = vst.msk [vmem:[#allocation2 + $0x188] sm:$0xff] %vm1089, %v1074
      %1140 = vst.msk [vmem:[#allocation2 + $0x190] sm:$0xff] %vm1089, %v1075
      %1141 = vst.msk [vmem:[#allocation2 + $0x198] sm:$0xff] %vm1089, %v1076
      %1142 = vst.msk [vmem:[#allocation2 + $0x1a0] sm:$0xff] %vm1089, %v1077
      %1143 = vst.msk [vmem:[#allocation2 + $0x1a8] sm:$0xff] %vm1089, %v1078
      %1144 = vst.msk [vmem:[#allocation2 + $0x1b0] sm:$0xff] %vm1089, %v1079
      %1145 = vst.msk [vmem:[#allocation2 + $0x1b8] sm:$0xff] %vm1089, %v1080
      %1146 = vst.msk [vmem:[#allocation2 + $0x1c0] sm:$0xff] %vm1089, %v1081
      %1147 = vst.msk [vmem:[#allocation2 + $0x1c8] sm:$0xff] %vm1089, %v1082
      %1148 = vst.msk [vmem:[#allocation2 + $0x1d0] sm:$0xff] %vm1089, %v1083
      %1149 = vst.msk [vmem:[#allocation2 + $0x1d8] sm:$0xff] %vm1089, %v1084
      %1150 = vst.msk [vmem:[#allocation2 + $0x1e0] sm:$0xff] %vm1089, %v1085
      %1151 = vst.msk [vmem:[#allocation2 + $0x1e8] sm:$0xff] %vm1089, %v1086
      %1152 = vst.msk [vmem:[#allocation2 + $0x1f0] sm:$0xff] %vm1089, %v1087
      %1153 = vst.msk [vmem:[#allocation2 + $0x1f8] sm:$0xff] %vm1089, %v1088
      // Predicated region
      $region37: #{tpu_custom_call.1} parent=31 // pred_check
        %p1154 = pneg %p260
      $region38: #{tpu_custom_call.1} parent=31 // pred_check_branch
        %1156 = sbr.rel (%p1154) target = $region40
      $region39: #{tpu_custom_call.1} parent=31 // pred_region
        %v1157 = vld [vmem:[#allocation2] sm:$0xff]
        %v1158 = vld [vmem:[#allocation2 + $0x8] sm:$0xff]
        %v1159 = vld [vmem:[#allocation2 + $0x10] sm:$0xff]
        %v1160 = vld [vmem:[#allocation2 + $0x18] sm:$0xff]
        %v1161 = vld [vmem:[#allocation2 + $0x20] sm:$0xff]
        %v1162 = vld [vmem:[#allocation2 + $0x28] sm:$0xff]
        %v1163 = vld [vmem:[#allocation2 + $0x30] sm:$0xff]
        %v1164 = vld [vmem:[#allocation2 + $0x38] sm:$0xff]
        %v1165 = vld [vmem:[#allocation2 + $0x40] sm:$0xff]
        %v1166 = vld [vmem:[#allocation2 + $0x48] sm:$0xff]
        %v1167 = vld [vmem:[#allocation2 + $0x50] sm:$0xff]
        %v1168 = vld [vmem:[#allocation2 + $0x58] sm:$0xff]
        %v1169 = vld [vmem:[#allocation2 + $0x60] sm:$0xff]
        %v1170 = vld [vmem:[#allocation2 + $0x68] sm:$0xff]
        %v1171 = vld [vmem:[#allocation2 + $0x70] sm:$0xff]
        %v1172 = vld [vmem:[#allocation2 + $0x78] sm:$0xff]
        %v1173 = vld [vmem:[#allocation2 + $0x80] sm:$0xff]
        %v1174 = vld [vmem:[#allocation2 + $0x88] sm:$0xff]
        %v1175 = vld [vmem:[#allocation2 + $0x90] sm:$0xff]
        %v1176 = vld [vmem:[#allocation2 + $0x98] sm:$0xff]
        %v1177 = vld [vmem:[#allocation2 + $0xa0] sm:$0xff]
        %v1178 = vld [vmem:[#allocation2 + $0xa8] sm:$0xff]
        %v1179 = vld [vmem:[#allocation2 + $0xb0] sm:$0xff]
        %v1180 = vld [vmem:[#allocation2 + $0xb8] sm:$0xff]
        %v1181 = vld [vmem:[#allocation2 + $0xc0] sm:$0xff]
        %v1182 = vld [vmem:[#allocation2 + $0xc8] sm:$0xff]
        %v1183 = vld [vmem:[#allocation2 + $0xd0] sm:$0xff]
        %v1184 = vld [vmem:[#allocation2 + $0xd8] sm:$0xff]
        %v1185 = vld [vmem:[#allocation2 + $0xe0] sm:$0xff]
        %v1186 = vld [vmem:[#allocation2 + $0xe8] sm:$0xff]
        %v1187 = vld [vmem:[#allocation2 + $0xf0] sm:$0xff]
        %v1188 = vld [vmem:[#allocation2 + $0xf8] sm:$0xff]
        %v1189 = vld [vmem:[#allocation2 + $0x100] sm:$0xff]
        %v1190 = vld [vmem:[#allocation2 + $0x108] sm:$0xff]
        %v1191 = vld [vmem:[#allocation2 + $0x110] sm:$0xff]
        %v1192 = vld [vmem:[#allocation2 + $0x118] sm:$0xff]
        %v1193 = vld [vmem:[#allocation2 + $0x120] sm:$0xff]
        %v1194 = vld [vmem:[#allocation2 + $0x128] sm:$0xff]
        %v1195 = vld [vmem:[#allocation2 + $0x130] sm:$0xff]
        %v1196 = vld [vmem:[#allocation2 + $0x138] sm:$0xff]
        %v1197 = vld [vmem:[#allocation2 + $0x140] sm:$0xff]
        %v1198 = vld [vmem:[#allocation2 + $0x148] sm:$0xff]
        %v1199 = vld [vmem:[#allocation2 + $0x150] sm:$0xff]
        %v1200 = vld [vmem:[#allocation2 + $0x158] sm:$0xff]
        %v1201 = vld [vmem:[#allocation2 + $0x160] sm:$0xff]
        %v1202 = vld [vmem:[#allocation2 + $0x168] sm:$0xff]
        %v1203 = vld [vmem:[#allocation2 + $0x170] sm:$0xff]
        %v1204 = vld [vmem:[#allocation2 + $0x178] sm:$0xff]
        %v1205 = vld [vmem:[#allocation2 + $0x180] sm:$0xff]
        %v1206 = vld [vmem:[#allocation2 + $0x188] sm:$0xff]
        %v1207 = vld [vmem:[#allocation2 + $0x190] sm:$0xff]
        %v1208 = vld [vmem:[#allocation2 + $0x198] sm:$0xff]
        %v1209 = vld [vmem:[#allocation2 + $0x1a0] sm:$0xff]
        %v1210 = vld [vmem:[#allocation2 + $0x1a8] sm:$0xff]
        %v1211 = vld [vmem:[#allocation2 + $0x1b0] sm:$0xff]
        %v1212 = vld [vmem:[#allocation2 + $0x1b8] sm:$0xff]
        %v1213 = vld [vmem:[#allocation2 + $0x1c0] sm:$0xff]
        %v1214 = vld [vmem:[#allocation2 + $0x1c8] sm:$0xff]
        %v1215 = vld [vmem:[#allocation2 + $0x1d0] sm:$0xff]
        %v1216 = vld [vmem:[#allocation2 + $0x1d8] sm:$0xff]
        %v1217 = vld [vmem:[#allocation2 + $0x1e0] sm:$0xff]
        %v1218 = vld [vmem:[#allocation2 + $0x1e8] sm:$0xff]
        %v1219 = vld [vmem:[#allocation2 + $0x1f0] sm:$0xff]
        %v1220 = vld [vmem:[#allocation2 + $0x1f8] sm:$0xff]
        %v1221 = vld [vmem:[%s249] sm:$0x1]
        %v1223 = vlaneseq
        %v1224 = vshrl.u32 %v1223, 7
        %v1225 = vsub.s32 0, %v1224
        %v1226 = vrot.slane %v1221, %v1225
        %v1228 = vadd.f32 %v1157, %v1226
        %v1229 = vadd.f32 %v1158, %v1226
        %v1230 = vadd.f32 %v1159, %v1226
        %v1231 = vadd.f32 %v1160, %v1226
        %v1232 = vadd.f32 %v1161, %v1226
        %v1233 = vadd.f32 %v1162, %v1226
        %v1234 = vadd.f32 %v1163, %v1226
        %v1235 = vadd.f32 %v1164, %v1226
        %v1236 = vadd.f32 %v1165, %v1226
        %v1237 = vadd.f32 %v1166, %v1226
        %v1238 = vadd.f32 %v1167, %v1226
        %v1239 = vadd.f32 %v1168, %v1226
        %v1240 = vadd.f32 %v1169, %v1226
        %v1241 = vadd.f32 %v1170, %v1226
        %v1242 = vadd.f32 %v1171, %v1226
        %v1243 = vadd.f32 %v1172, %v1226
        %v1244 = vadd.f32 %v1173, %v1226
        %v1245 = vadd.f32 %v1174, %v1226
        %v1246 = vadd.f32 %v1175, %v1226
        %v1247 = vadd.f32 %v1176, %v1226
        %v1248 = vadd.f32 %v1177, %v1226
        %v1249 = vadd.f32 %v1178, %v1226
        %v1250 = vadd.f32 %v1179, %v1226
        %v1251 = vadd.f32 %v1180, %v1226
        %v1252 = vadd.f32 %v1181, %v1226
        %v1253 = vadd.f32 %v1182, %v1226
        %v1254 = vadd.f32 %v1183, %v1226
        %v1255 = vadd.f32 %v1184, %v1226
        %v1256 = vadd.f32 %v1185, %v1226
        %v1257 = vadd.f32 %v1186, %v1226
        %v1258 = vadd.f32 %v1187, %v1226
        %v1259 = vadd.f32 %v1188, %v1226
        %v1260 = vadd.f32 %v1189, %v1226
        %v1261 = vadd.f32 %v1190, %v1226
        %v1262 = vadd.f32 %v1191, %v1226
        %v1263 = vadd.f32 %v1192, %v1226
        %v1264 = vadd.f32 %v1193, %v1226
        %v1265 = vadd.f32 %v1194, %v1226
        %v1266 = vadd.f32 %v1195, %v1226
        %v1267 = vadd.f32 %v1196, %v1226
        %v1268 = vadd.f32 %v1197, %v1226
        %v1269 = vadd.f32 %v1198, %v1226
        %v1270 = vadd.f32 %v1199, %v1226
        %v1271 = vadd.f32 %v1200, %v1226
        %v1272 = vadd.f32 %v1201, %v1226
        %v1273 = vadd.f32 %v1202, %v1226
        %v1274 = vadd.f32 %v1203, %v1226
        %v1275 = vadd.f32 %v1204, %v1226
        %v1276 = vadd.f32 %v1205, %v1226
        %v1277 = vadd.f32 %v1206, %v1226
        %v1278 = vadd.f32 %v1207, %v1226
        %v1279 = vadd.f32 %v1208, %v1226
        %v1280 = vadd.f32 %v1209, %v1226
        %v1281 = vadd.f32 %v1210, %v1226
        %v1282 = vadd.f32 %v1211, %v1226
        %v1283 = vadd.f32 %v1212, %v1226
        %v1284 = vadd.f32 %v1213, %v1226
        %v1285 = vadd.f32 %v1214, %v1226
        %v1286 = vadd.f32 %v1215, %v1226
        %v1287 = vadd.f32 %v1216, %v1226
        %v1288 = vadd.f32 %v1217, %v1226
        %v1289 = vadd.f32 %v1218, %v1226
        %v1290 = vadd.f32 %v1219, %v1226
        %v1291 = vadd.f32 %v1220, %v1226
        %v1292 = vpack.c.bf16 %v1229, %v1228
        %v1293 = vpack.c.bf16 %v1231, %v1230
        %v1294 = vpack.c.bf16 %v1233, %v1232
        %v1295 = vpack.c.bf16 %v1235, %v1234
        %v1296 = vpack.c.bf16 %v1237, %v1236
        %v1297 = vpack.c.bf16 %v1239, %v1238
        %v1298 = vpack.c.bf16 %v1241, %v1240
        %v1299 = vpack.c.bf16 %v1243, %v1242
        %v1300 = vpack.c.bf16 %v1245, %v1244
        %v1301 = vpack.c.bf16 %v1247, %v1246
        %v1302 = vpack.c.bf16 %v1249, %v1248
        %v1303 = vpack.c.bf16 %v1251, %v1250
        %v1304 = vpack.c.bf16 %v1253, %v1252
        %v1305 = vpack.c.bf16 %v1255, %v1254
        %v1306 = vpack.c.bf16 %v1257, %v1256
        %v1307 = vpack.c.bf16 %v1259, %v1258
        %v1308 = vpack.c.bf16 %v1261, %v1260
        %v1309 = vpack.c.bf16 %v1263, %v1262
        %v1310 = vpack.c.bf16 %v1265, %v1264
        %v1311 = vpack.c.bf16 %v1267, %v1266
        %v1312 = vpack.c.bf16 %v1269, %v1268
        %v1313 = vpack.c.bf16 %v1271, %v1270
        %v1314 = vpack.c.bf16 %v1273, %v1272
        %v1315 = vpack.c.bf16 %v1275, %v1274
        %v1316 = vpack.c.bf16 %v1277, %v1276
        %v1317 = vpack.c.bf16 %v1279, %v1278
        %v1318 = vpack.c.bf16 %v1281, %v1280
        %v1319 = vpack.c.bf16 %v1283, %v1282
        %v1320 = vpack.c.bf16 %v1285, %v1284
        %v1321 = vpack.c.bf16 %v1287, %v1286
        %v1322 = vpack.c.bf16 %v1289, %v1288
        %v1323 = vpack.c.bf16 %v1291, %v1290
        %v1356 = vunpack.c.l.b16 %v1292
        %v1357 = vunpack.c.h.b16 %v1292
        %v1358 = vunpack.c.l.b16 %v1293
        %v1359 = vunpack.c.h.b16 %v1293
        %v1360 = vunpack.c.l.b16 %v1294
        %v1361 = vunpack.c.h.b16 %v1294
        %v1362 = vunpack.c.l.b16 %v1295
        %v1363 = vunpack.c.h.b16 %v1295
        %v1364 = vunpack.c.l.b16 %v1296
        %v1365 = vunpack.c.h.b16 %v1296
        %v1366 = vunpack.c.l.b16 %v1297
        %v1367 = vunpack.c.h.b16 %v1297
        %v1368 = vunpack.c.l.b16 %v1298
        %v1369 = vunpack.c.h.b16 %v1298
        %v1370 = vunpack.c.l.b16 %v1299
        %v1371 = vunpack.c.h.b16 %v1299
        %v1372 = vunpack.c.l.b16 %v1300
        %v1373 = vunpack.c.h.b16 %v1300
        %v1374 = vunpack.c.l.b16 %v1301
        %v1375 = vunpack.c.h.b16 %v1301
        %v1376 = vunpack.c.l.b16 %v1302
        %v1377 = vunpack.c.h.b16 %v1302
        %v1378 = vunpack.c.l.b16 %v1303
        %v1379 = vunpack.c.h.b16 %v1303
        %v1380 = vunpack.c.l.b16 %v1304
        %v1381 = vunpack.c.h.b16 %v1304
        %v1382 = vunpack.c.l.b16 %v1305
        %v1383 = vunpack.c.h.b16 %v1305
        %v1384 = vunpack.c.l.b16 %v1306
        %v1385 = vunpack.c.h.b16 %v1306
        %v1386 = vunpack.c.l.b16 %v1307
        %v1387 = vunpack.c.h.b16 %v1307
        %v1388 = vunpack.c.l.b16 %v1308
        %v1389 = vunpack.c.h.b16 %v1308
        %v1390 = vunpack.c.l.b16 %v1309
        %v1391 = vunpack.c.h.b16 %v1309
        %v1392 = vunpack.c.l.b16 %v1310
        %v1393 = vunpack.c.h.b16 %v1310
        %v1394 = vunpack.c.l.b16 %v1311
        %v1395 = vunpack.c.h.b16 %v1311
        %v1396 = vunpack.c.l.b16 %v1312
        %v1397 = vunpack.c.h.b16 %v1312
        %v1398 = vunpack.c.l.b16 %v1313
        %v1399 = vunpack.c.h.b16 %v1313
        %v1400 = vunpack.c.l.b16 %v1314
        %v1401 = vunpack.c.h.b16 %v1314
        %v1402 = vunpack.c.l.b16 %v1315
        %v1403 = vunpack.c.h.b16 %v1315
        %v1404 = vunpack.c.l.b16 %v1316
        %v1405 = vunpack.c.h.b16 %v1316
        %v1406 = vunpack.c.l.b16 %v1317
        %v1407 = vunpack.c.h.b16 %v1317
        %v1408 = vunpack.c.l.b16 %v1318
        %v1409 = vunpack.c.h.b16 %v1318
        %v1410 = vunpack.c.l.b16 %v1319
        %v1411 = vunpack.c.h.b16 %v1319
        %v1412 = vunpack.c.l.b16 %v1320
        %v1413 = vunpack.c.h.b16 %v1320
        %v1414 = vunpack.c.l.b16 %v1321
        %v1415 = vunpack.c.h.b16 %v1321
        %v1416 = vunpack.c.l.b16 %v1322
        %v1417 = vunpack.c.h.b16 %v1322
        %v1418 = vunpack.c.l.b16 %v1323
        %v1419 = vunpack.c.h.b16 %v1323
        %v1420 = vpack.c.b16 %v1356, %v1356
        %v1421 = vpack.c.b16 %v1357, %v1357
        %v1422 = vpack.c.b16 %v1358, %v1358
        %v1423 = vpack.c.b16 %v1359, %v1359
        %v1424 = vpack.c.b16 %v1360, %v1360
        %v1425 = vpack.c.b16 %v1361, %v1361
        %v1426 = vpack.c.b16 %v1362, %v1362
        %v1427 = vpack.c.b16 %v1363, %v1363
        %v1428 = vpack.c.b16 %v1364, %v1364
        %v1429 = vpack.c.b16 %v1365, %v1365
        %v1430 = vpack.c.b16 %v1366, %v1366
        %v1431 = vpack.c.b16 %v1367, %v1367
        %v1432 = vpack.c.b16 %v1368, %v1368
        %v1433 = vpack.c.b16 %v1369, %v1369
        %v1434 = vpack.c.b16 %v1370, %v1370
        %v1435 = vpack.c.b16 %v1371, %v1371
        %v1436 = vpack.c.b16 %v1372, %v1372
        %v1437 = vpack.c.b16 %v1373, %v1373
        %v1438 = vpack.c.b16 %v1374, %v1374
        %v1439 = vpack.c.b16 %v1375, %v1375
        %v1440 = vpack.c.b16 %v1376, %v1376
        %v1441 = vpack.c.b16 %v1377, %v1377
        %v1442 = vpack.c.b16 %v1378, %v1378
        %v1443 = vpack.c.b16 %v1379, %v1379
        %v1444 = vpack.c.b16 %v1380, %v1380
        %v1445 = vpack.c.b16 %v1381, %v1381
        %v1446 = vpack.c.b16 %v1382, %v1382
        %v1447 = vpack.c.b16 %v1383, %v1383
        %v1448 = vpack.c.b16 %v1384, %v1384
        %v1449 = vpack.c.b16 %v1385, %v1385
        %v1450 = vpack.c.b16 %v1386, %v1386
        %v1451 = vpack.c.b16 %v1387, %v1387
        %v1452 = vpack.c.b16 %v1388, %v1388
        %v1453 = vpack.c.b16 %v1389, %v1389
        %v1454 = vpack.c.b16 %v1390, %v1390
        %v1455 = vpack.c.b16 %v1391, %v1391
        %v1456 = vpack.c.b16 %v1392, %v1392
        %v1457 = vpack.c.b16 %v1393, %v1393
        %v1458 = vpack.c.b16 %v1394, %v1394
        %v1459 = vpack.c.b16 %v1395, %v1395
        %v1460 = vpack.c.b16 %v1396, %v1396
        %v1461 = vpack.c.b16 %v1397, %v1397
        %v1462 = vpack.c.b16 %v1398, %v1398
        %v1463 = vpack.c.b16 %v1399, %v1399
        %v1464 = vpack.c.b16 %v1400, %v1400
        %v1465 = vpack.c.b16 %v1401, %v1401
        %v1466 = vpack.c.b16 %v1402, %v1402
        %v1467 = vpack.c.b16 %v1403, %v1403
        %v1468 = vpack.c.b16 %v1404, %v1404
        %v1469 = vpack.c.b16 %v1405, %v1405
        %v1470 = vpack.c.b16 %v1406, %v1406
        %v1471 = vpack.c.b16 %v1407, %v1407
        %v1472 = vpack.c.b16 %v1408, %v1408
        %v1473 = vpack.c.b16 %v1409, %v1409
        %v1474 = vpack.c.b16 %v1410, %v1410
        %v1475 = vpack.c.b16 %v1411, %v1411
        %v1476 = vpack.c.b16 %v1412, %v1412
        %v1477 = vpack.c.b16 %v1413, %v1413
        %v1478 = vpack.c.b16 %v1414, %v1414
        %v1479 = vpack.c.b16 %v1415, %v1415
        %v1480 = vpack.c.b16 %v1416, %v1416
        %v1481 = vpack.c.b16 %v1417, %v1417
        %v1482 = vpack.c.b16 %v1418, %v1418
        %v1483 = vpack.c.b16 %v1419, %v1419
        %vm1548 = vcmask 60416
        %1549 = vst.msk [vmem:[%s257] sm:$0xf] %vm1548, %v1420
        %1550 = vst.msk [vmem:[%s257 + $0x4] sm:$0xf] %vm1548, %v1421
        %1551 = vst.msk [vmem:[%s257 + $0x8] sm:$0xf] %vm1548, %v1422
        %1552 = vst.msk [vmem:[%s257 + $0xc] sm:$0xf] %vm1548, %v1423
        %1553 = vst.msk [vmem:[%s257 + $0x10] sm:$0xf] %vm1548, %v1424
        %1554 = vst.msk [vmem:[%s257 + $0x14] sm:$0xf] %vm1548, %v1425
        %1555 = vst.msk [vmem:[%s257 + $0x18] sm:$0xf] %vm1548, %v1426
        %1556 = vst.msk [vmem:[%s257 + $0x1c] sm:$0xf] %vm1548, %v1427
        %1557 = vst.msk [vmem:[%s257 + $0x20] sm:$0xf] %vm1548, %v1428
        %1558 = vst.msk [vmem:[%s257 + $0x24] sm:$0xf] %vm1548, %v1429
        %1559 = vst.msk [vmem:[%s257 + $0x28] sm:$0xf] %vm1548, %v1430
        %1560 = vst.msk [vmem:[%s257 + $0x2c] sm:$0xf] %vm1548, %v1431
        %1561 = vst.msk [vmem:[%s257 + $0x30] sm:$0xf] %vm1548, %v1432
        %1562 = vst.msk [vmem:[%s257 + $0x34] sm:$0xf] %vm1548, %v1433
        %1563 = vst.msk [vmem:[%s257 + $0x38] sm:$0xf] %vm1548, %v1434
        %1564 = vst.msk [vmem:[%s257 + $0x3c] sm:$0xf] %vm1548, %v1435
        %1565 = vst.msk [vmem:[%s257 + $0x40] sm:$0xf] %vm1548, %v1436
        %1566 = vst.msk [vmem:[%s257 + $0x44] sm:$0xf] %vm1548, %v1437
        %1567 = vst.msk [vmem:[%s257 + $0x48] sm:$0xf] %vm1548, %v1438
        %1568 = vst.msk [vmem:[%s257 + $0x4c] sm:$0xf] %vm1548, %v1439
        %1569 = vst.msk [vmem:[%s257 + $0x50] sm:$0xf] %vm1548, %v1440
        %1570 = vst.msk [vmem:[%s257 + $0x54] sm:$0xf] %vm1548, %v1441
        %1571 = vst.msk [vmem:[%s257 + $0x58] sm:$0xf] %vm1548, %v1442
        %1572 = vst.msk [vmem:[%s257 + $0x5c] sm:$0xf] %vm1548, %v1443
        %1573 = vst.msk [vmem:[%s257 + $0x60] sm:$0xf] %vm1548, %v1444
        %1574 = vst.msk [vmem:[%s257 + $0x64] sm:$0xf] %vm1548, %v1445
        %1575 = vst.msk [vmem:[%s257 + $0x68] sm:$0xf] %vm1548, %v1446
        %1576 = vst.msk [vmem:[%s257 + $0x6c] sm:$0xf] %vm1548, %v1447
        %1577 = vst.msk [vmem:[%s257 + $0x70] sm:$0xf] %vm1548, %v1448
        %1578 = vst.msk [vmem:[%s257 + $0x74] sm:$0xf] %vm1548, %v1449
        %1579 = vst.msk [vmem:[%s257 + $0x78] sm:$0xf] %vm1548, %v1450
        %1580 = vst.msk [vmem:[%s257 + $0x7c] sm:$0xf] %vm1548, %v1451
        %1581 = vst.msk [vmem:[%s257 + $0x80] sm:$0xf] %vm1548, %v1452
        %1582 = vst.msk [vmem:[%s257 + $0x84] sm:$0xf] %vm1548, %v1453
        %1583 = vst.msk [vmem:[%s257 + $0x88] sm:$0xf] %vm1548, %v1454
        %1584 = vst.msk [vmem:[%s257 + $0x8c] sm:$0xf] %vm1548, %v1455
        %1585 = vst.msk [vmem:[%s257 + $0x90] sm:$0xf] %vm1548, %v1456
        %1586 = vst.msk [vmem:[%s257 + $0x94] sm:$0xf] %vm1548, %v1457
        %1587 = vst.msk [vmem:[%s257 + $0x98] sm:$0xf] %vm1548, %v1458
        %1588 = vst.msk [vmem:[%s257 + $0x9c] sm:$0xf] %vm1548, %v1459
        %1589 = vst.msk [vmem:[%s257 + $0xa0] sm:$0xf] %vm1548, %v1460
        %1590 = vst.msk [vmem:[%s257 + $0xa4] sm:$0xf] %vm1548, %v1461
        %1591 = vst.msk [vmem:[%s257 + $0xa8] sm:$0xf] %vm1548, %v1462
        %1592 = vst.msk [vmem:[%s257 + $0xac] sm:$0xf] %vm1548, %v1463
        %1593 = vst.msk [vmem:[%s257 + $0xb0] sm:$0xf] %vm1548, %v1464
        %1594 = vst.msk [vmem:[%s257 + $0xb4] sm:$0xf] %vm1548, %v1465
        %1595 = vst.msk [vmem:[%s257 + $0xb8] sm:$0xf] %vm1548, %v1466
        %1596 = vst.msk [vmem:[%s257 + $0xbc] sm:$0xf] %vm1548, %v1467
        %1597 = vst.msk [vmem:[%s257 + $0xc0] sm:$0xf] %vm1548, %v1468
        %1598 = vst.msk [vmem:[%s257 + $0xc4] sm:$0xf] %vm1548, %v1469
        %1599 = vst.msk [vmem:[%s257 + $0xc8] sm:$0xf] %vm1548, %v1470
        %1600 = vst.msk [vmem:[%s257 + $0xcc] sm:$0xf] %vm1548, %v1471
        %1601 = vst.msk [vmem:[%s257 + $0xd0] sm:$0xf] %vm1548, %v1472
        %1602 = vst.msk [vmem:[%s257 + $0xd4] sm:$0xf] %vm1548, %v1473
        %1603 = vst.msk [vmem:[%s257 + $0xd8] sm:$0xf] %vm1548, %v1474
        %1604 = vst.msk [vmem:[%s257 + $0xdc] sm:$0xf] %vm1548, %v1475
        %1605 = vst.msk [vmem:[%s257 + $0xe0] sm:$0xf] %vm1548, %v1476
        %1606 = vst.msk [vmem:[%s257 + $0xe4] sm:$0xf] %vm1548, %v1477
        %1607 = vst.msk [vmem:[%s257 + $0xe8] sm:$0xf] %vm1548, %v1478
        %1608 = vst.msk [vmem:[%s257 + $0xec] sm:$0xf] %vm1548, %v1479
        %1609 = vst.msk [vmem:[%s257 + $0xf0] sm:$0xf] %vm1548, %v1480
        %1610 = vst.msk [vmem:[%s257 + $0xf4] sm:$0xf] %vm1548, %v1481
        %1611 = vst.msk [vmem:[%s257 + $0xf8] sm:$0xf] %vm1548, %v1482
        %1612 = vst.msk [vmem:[%s257 + $0xfc] sm:$0xf] %vm1548, %v1483
      $region40: #{tpu_custom_call.1} parent=31 // pred_fallthru
        _
      %s1613 = smul.u32 64, %s19
      %p1614 = scmp.lt.s32.totalorder %s1613, 127
      %s1615 = scalar_select %p1614, %s1613, 127
      %p1616 = scmp.lt.s32.totalorder %s20, 0
      %s1617 = scalar_select %p1616, %s20, 0
      %s1618 = sadd.s32 %s1617, %s1615
      %s1619 = smul.addr %s1618, 4
      %s1620 = scalar_lea.vmem %s3, %s1619
      // Predicated region
      $region41: #{tpu_custom_call.1} parent=31 // pred_check
        %p1621 = pneg %p135
      $region42: #{tpu_custom_call.1} parent=31 // pred_check_branch
        %1623 = sbr.rel (%p1621) target = $region44
      $region43: #{tpu_custom_call.1} parent=31 // pred_region
        %s1624 = smul.u32 64, %s19
      $region44: #{tpu_custom_call.1} parent=31 // pred_fallthru
        _
    $region32: #{tpu_custom_call.1} parent=5 // pred_fallthru
      _
    %p1625 = scmp.le.s32.totalorder 2, %s9
    // Predicated region
    $region45: #{tpu_custom_call.1} parent=5 // pred_check
      %p1626 = pneg %p1625
    $region46: #{tpu_custom_call.1} parent=5 // pred_check_branch
      %1628 = sbr.rel (%p1626) target = $region48
    $region47: #{tpu_custom_call.1} parent=5 // pred_region
      %s1629 = ssub.s32 %s9, 2
      // Predicated region
      $region49: #{tpu_custom_call.1} parent=47 // pred_check
        %p1630 = pneg %p141
      $region50: #{tpu_custom_call.1} parent=47 // pred_check_branch
        %1632 = sbr.rel (%p1630) target = $region52
      $region51: #{tpu_custom_call.1} parent=47 // pred_region
        %s1633 = smul.u32 64, %s22
        %p1634 = scmp.lt.s32.totalorder %s1633, 127
        %s1635 = scalar_select %p1634, %s1633, 127
        %p1636 = scmp.lt.s32.totalorder %s23, 0
        %s1637 = scalar_select %p1636, %s23, 0
        %s1638 = sadd.s32 %s1637, %s1635
        %s1639 = smul.addr %s1638, 4
        %s1640 = scalar_lea.vmem %s3, %s1639
      $region52: #{tpu_custom_call.1} parent=47 // pred_fallthru
        _
    $region48: #{tpu_custom_call.1} parent=5 // pred_fallthru
      _
  $region6: #{tpu_custom_call.1} parent=0 // loop_footer
    %s13 = sadd.s32 1, %s9
  $region7: #{tpu_custom_call.1} parent=0 // loop_footer_branch
    %8 = sbr.rel target = $region3
  $region8: #{tpu_custom_call.1} parent=0 // loop_exit
    _

</llo_original>
